<compile_context>
chip_gen: v6e
topology: v6e:2x2x1
jax: 0.10.0
libtpu: 0.0.40
codegen_flags: <defaults>
</compile_context>

<pallas_src>
import functools

import jax
import jax.numpy as jnp
from jax.experimental import pallas as pl
from jax.experimental.pallas import tpu as pltpu


def _lstm_kernel(x_ref,        # (T*B, I)   time-major flattened input
                 wih0_ref,     # (I, 4H)    layer-0 input weights (pre-transposed)
                 whh0_ref,     # (H, 4H)    layer-0 recurrent weights (pre-transposed)
                 b0_ref,       # (1, 4H)    bih0 + bhh0
                 w1_ref,       # (2H, 4H)   [Wih1; Whh1] stacked along K (pre-transposed)
                 b1_ref,       # (1, 4H)    bih1 + bhh1
                 wfc_ref,      # (H, NPAD)  lane-padded FC weight (pre-transposed)
                 bfc_ref,      # (1, NPAD)  lane-padded FC bias
                 out_ref,      # (B, NPAD)
                 *, T, B, H):
    # --- prologue: layer-0 input projection for ALL timesteps (no recurrent dep)
    xp = (jnp.dot(x_ref[...], wih0_ref[...], preferred_element_type=jnp.float32)
          + b0_ref[...])                                          # (T*B, 4H)

    whh0 = whh0_ref[...]
    w1 = w1_ref[...]
    b1 = b1_ref[...]

    h0 = jnp.zeros((B, H), jnp.float32)
    c0 = jnp.zeros((B, H), jnp.float32)
    h1 = jnp.zeros((B, H), jnp.float32)
    c1 = jnp.zeros((B, H), jnp.float32)

    def gates_to_state(g, c_prev):
        # full-vreg EUP ops, then slice the 4 gates out.
        sg = jax.nn.sigmoid(g)
        tg = jnp.tanh(g)
        i = sg[:, 0 * H:1 * H]
        f = sg[:, 1 * H:2 * H]
        gg = tg[:, 2 * H:3 * H]
        o = sg[:, 3 * H:4 * H]
        c_new = f * c_prev + i * gg
        h_new = o * jnp.tanh(c_new)
        return h_new, c_new

    # --- recurrence (T is static and tiny -> fully unrolled)
    for t in range(T):
        # layer 0: recurrent part only (input part precomputed in prologue)
        g0 = xp[t * B:(t + 1) * B, :] + jnp.dot(
            h0, whh0, preferred_element_type=jnp.float32)
        h0, c0 = gates_to_state(g0, c0)

        # inter-layer dropout: identity in eval mode
        # layer 1: fused [x_in | h] @ [Wih1; Whh1] -> single MXU push
        g1 = jnp.dot(jnp.concatenate([h0, h1], axis=1), w1,
                     preferred_element_type=jnp.float32) + b1
        h1, c1 = gates_to_state(g1, c1)

    # --- epilogue: dropout on last-timestep output (identity in eval mode),
    # lane-dense FC (padded to 128 lanes; wrapper slices [:, :2]).
    out_ref[...] = (jnp.dot(h1, wfc_ref[...], preferred_element_type=jnp.float32)
                    + bfc_ref[...])


def lstm_module_forward(x, params):
    """x: (B, T, I) float32.  Returns (B, 2) float32."""
    B, T, I = x.shape
    H = params["whh0"].shape[1]        # whh0 is (4H, H) -> H = shape[1]
    NPAD = 128                         # lane-dense FC output width

    # time-major, flattened: row t*B + b == x[b, t, :]
    x_tm = jnp.transpose(x, (1, 0, 2)).reshape(T * B, I)

    wih0 = params["wih0"].T                                             # (I, 4H)
    whh0 = params["whh0"].T                                             # (H, 4H)
    b0 = (params["bih0"] + params["bhh0"])[None, :]                     # (1, 4H)
    w1 = jnp.concatenate([params["wih1"].T, params["whh1"].T], axis=0)  # (2H, 4H)
    b1 = (params["bih1"] + params["bhh1"])[None, :]                     # (1, 4H)
    wfc = jnp.zeros((H, NPAD), jnp.float32).at[:, :2].set(params["wfc"].T)
    bfc = jnp.zeros((1, NPAD), jnp.float32).at[:, :2].set(params["bfc"])

    vmem = pl.BlockSpec(memory_space=pltpu.MemorySpace.VMEM)
    out = pl.pallas_call(
        functools.partial(_lstm_kernel, T=T, B=B, H=H),
        out_shape=jax.ShapeDtypeStruct((B, NPAD), jnp.float32),
        in_specs=[vmem] * 8,
        out_specs=vmem,
    )(x_tm, wih0, whh0, b0, w1, b1, wfc, bfc)
    return out[:, :2]


def _init_params(key, input_size, hidden_size):
    """Deterministic init mimicking PyTorch's U(-1/sqrt(H), 1/sqrt(H))."""
    H = hidden_size
    bound = 1.0 / jnp.sqrt(jnp.float32(H))
    ks = jax.random.split(key, 10)
    u = lambda k, shape: jax.random.uniform(k, shape, jnp.float32, -bound, bound)
    return {
        "wih0": u(ks[0], (4 * H, input_size)),
        "whh0": u(ks[1], (4 * H, H)),
        "bih0": u(ks[2], (4 * H,)),
        "bhh0": u(ks[3], (4 * H,)),
        "wih1": u(ks[4], (4 * H, H)),
        "whh1": u(ks[5], (4 * H, H)),
        "bih1": u(ks[6], (4 * H,)),
        "bhh1": u(ks[7], (4 * H,)),
        "wfc": u(ks[8], (2, H)),
        "bfc": u(ks[9], (2,)),
    }


def _reference_forward(x, params):
    """Pure-JAX reference (matches PyTorch LSTM semantics, eval mode)."""
    B, T, I = x.shape
    H = params["whh0"].shape[1]

    def cell(xt, h, c, wih, whh, bih, bhh):
        g = xt @ wih.T + h @ whh.T + bih + bhh
        i = jax.nn.sigmoid(g[:, :H])
        f = jax.nn.sigmoid(g[:, H:2 * H])
        gg = jnp.tanh(g[:, 2 * H:3 * H])
        o = jax.nn.sigmoid(g[:, 3 * H:])
        c = f * c + i * gg
        h = o * jnp.tanh(c)
        return h, c

    h0 = c0 = h1 = c1 = jnp.zeros((B, H), jnp.float32)
    for t in range(T):
        h0, c0 = cell(x[:, t, :], h0, c0,
                      params["wih0"], params["whh0"], params["bih0"], params["bhh0"])
        h1, c1 = cell(h0, h1, c1,
                      params["wih1"], params["whh1"], params["bih1"], params["bhh1"])
    return h1 @ params["wfc"].T + params["bfc"]


if __name__ == "__main__":
    B, T, I, H = 8, 8, 16, 32
    key = jax.random.PRNGKey(0)
    kx, kp = jax.random.split(key)
    x = jax.random.normal(kx, (B, T, I), jnp.float32)
    params = _init_params(kp, I, H)

    out = lstm_module_forward(x, params)
    out = jax.block_until_ready(out)

    ref = _reference_forward(x, params)
    assert out.shape == (B, 2)
    assert jnp.allclose(out, ref, atol=2e-4, rtol=2e-4), "mismatch vs reference"

    print("KERNEL_OK")
</pallas_src>

<mosaic_0001>
module attributes {stable_mosaic.version = 11 : i64} {
  func.func @_lstm_kernel(%arg0: memref<64x16xf32, #tpu.memory_space<vmem>>, %arg1: memref<16x128xf32, #tpu.memory_space<vmem>>, %arg2: memref<32x128xf32, #tpu.memory_space<vmem>>, %arg3: memref<1x128xf32, #tpu.memory_space<vmem>>, %arg4: memref<64x128xf32, #tpu.memory_space<vmem>>, %arg5: memref<1x128xf32, #tpu.memory_space<vmem>>, %arg6: memref<32x128xf32, #tpu.memory_space<vmem>>, %arg7: memref<1x128xf32, #tpu.memory_space<vmem>>, %arg8: memref<8x128xf32, #tpu.memory_space<vmem>>) attributes {dimension_semantics = [], scalar_prefetch = 0 : i64, scratch_operands = 0 : i64, tpu.core_type = #tpu.core_type<tc>} {
    %c0 = arith.constant 0 : index
    %c0_0 = arith.constant 0 : index
    %0 = vector.load %arg0[%c0, %c0_0] : memref<64x16xf32, #tpu.memory_space<vmem>>, vector<64x16xf32>
    %c0_1 = arith.constant 0 : index
    %c0_2 = arith.constant 0 : index
    %1 = vector.load %arg1[%c0_1, %c0_2] : memref<16x128xf32, #tpu.memory_space<vmem>>, vector<16x128xf32>
    %cst = arith.constant dense<0.000000e+00> : vector<64x128xf32>
    %2 = tpu.matmul %0, %1, %cst {dimension_numbers = #tpu.dot_dimension_numbers<[1], [0], [0], [1], [0, 0, 1, 1], [], []>} : vector<64x16xf32>, vector<16x128xf32>, vector<64x128xf32> -> vector<64x128xf32>
    %c0_3 = arith.constant 0 : index
    %c0_4 = arith.constant 0 : index
    %3 = vector.load %arg3[%c0_3, %c0_4] : memref<1x128xf32, #tpu.memory_space<vmem>>, vector<1x128xf32>
    %4 = vector.broadcast %3 : vector<1x128xf32> to vector<64x128xf32>
    %5 = arith.addf %2, %4 : vector<64x128xf32>
    %c0_5 = arith.constant 0 : index
    %c0_6 = arith.constant 0 : index
    %6 = vector.load %arg2[%c0_5, %c0_6] : memref<32x128xf32, #tpu.memory_space<vmem>>, vector<32x128xf32>
    %c0_7 = arith.constant 0 : index
    %c0_8 = arith.constant 0 : index
    %7 = vector.load %arg4[%c0_7, %c0_8] : memref<64x128xf32, #tpu.memory_space<vmem>>, vector<64x128xf32>
    %c0_9 = arith.constant 0 : index
    %c0_10 = arith.constant 0 : index
    %8 = vector.load %arg5[%c0_9, %c0_10] : memref<1x128xf32, #tpu.memory_space<vmem>>, vector<1x128xf32>
    %cst_11 = arith.constant 0.000000e+00 : f32
    %9 = vector.broadcast %cst_11 : f32 to vector<8x32xf32>
    %cst_12 = arith.constant 0.000000e+00 : f32
    %10 = vector.broadcast %cst_12 : f32 to vector<8x32xf32>
    %cst_13 = arith.constant 0.000000e+00 : f32
    %11 = vector.broadcast %cst_13 : f32 to vector<8x32xf32>
    %cst_14 = arith.constant 0.000000e+00 : f32
    %12 = vector.broadcast %cst_14 : f32 to vector<8x32xf32>
    %13 = vector.extract_strided_slice %5 {offsets = [0, 0], sizes = [8, 128], strides = [1, 1]} : vector<64x128xf32> to vector<8x128xf32>
    %cst_15 = arith.constant dense<0.000000e+00> : vector<8x128xf32>
    %14 = tpu.matmul %9, %6, %cst_15 {dimension_numbers = #tpu.dot_dimension_numbers<[1], [0], [0], [1], [0, 0, 1, 1], [], []>} : vector<8x32xf32>, vector<32x128xf32>, vector<8x128xf32> -> vector<8x128xf32>
    %15 = arith.addf %13, %14 : vector<8x128xf32>
    %16 = arith.negf %15 : vector<8x128xf32>
    %17 = math.exp %16 : vector<8x128xf32>
    %cst_16 = arith.constant 1.000000e+00 : f32
    %18 = vector.broadcast %cst_16 : f32 to vector<8x128xf32>
    %19 = arith.addf %18, %17 : vector<8x128xf32>
    %20 = arith.divf %18, %19 : vector<8x128xf32>
    %21 = math.tanh %15 : vector<8x128xf32>
    %22 = vector.extract_strided_slice %20 {offsets = [0, 0], sizes = [8, 32], strides = [1, 1]} : vector<8x128xf32> to vector<8x32xf32>
    %23 = vector.extract_strided_slice %20 {offsets = [0, 32], sizes = [8, 32], strides = [1, 1]} : vector<8x128xf32> to vector<8x32xf32>
    %24 = vector.extract_strided_slice %21 {offsets = [0, 64], sizes = [8, 32], strides = [1, 1]} : vector<8x128xf32> to vector<8x32xf32>
    %25 = vector.extract_strided_slice %20 {offsets = [0, 96], sizes = [8, 32], strides = [1, 1]} : vector<8x128xf32> to vector<8x32xf32>
    %26 = arith.mulf %23, %10 : vector<8x32xf32>
    %27 = arith.mulf %22, %24 : vector<8x32xf32>
    %28 = arith.addf %26, %27 : vector<8x32xf32>
    %29 = math.tanh %28 : vector<8x32xf32>
    %30 = arith.mulf %25, %29 : vector<8x32xf32>
    %31 = tpu.concatenate %30, %11 in 1 : vector<8x32xf32>, vector<8x32xf32> -> vector<8x64xf32>
    %cst_17 = arith.constant dense<0.000000e+00> : vector<8x128xf32>
    %32 = tpu.matmul %31, %7, %cst_17 {dimension_numbers = #tpu.dot_dimension_numbers<[1], [0], [0], [1], [0, 0, 1, 1], [], []>} : vector<8x64xf32>, vector<64x128xf32>, vector<8x128xf32> -> vector<8x128xf32>
    %33 = vector.broadcast %8 : vector<1x128xf32> to vector<8x128xf32>
    %34 = arith.addf %32, %33 : vector<8x128xf32>
    %35 = arith.negf %34 : vector<8x128xf32>
    %36 = math.exp %35 : vector<8x128xf32>
    %cst_18 = arith.constant 1.000000e+00 : f32
    %37 = vector.broadcast %cst_18 : f32 to vector<8x128xf32>
    %38 = arith.addf %37, %36 : vector<8x128xf32>
    %39 = arith.divf %37, %38 : vector<8x128xf32>
    %40 = math.tanh %34 : vector<8x128xf32>
    %41 = vector.extract_strided_slice %39 {offsets = [0, 0], sizes = [8, 32], strides = [1, 1]} : vector<8x128xf32> to vector<8x32xf32>
    %42 = vector.extract_strided_slice %39 {offsets = [0, 32], sizes = [8, 32], strides = [1, 1]} : vector<8x128xf32> to vector<8x32xf32>
    %43 = vector.extract_strided_slice %40 {offsets = [0, 64], sizes = [8, 32], strides = [1, 1]} : vector<8x128xf32> to vector<8x32xf32>
    %44 = vector.extract_strided_slice %39 {offsets = [0, 96], sizes = [8, 32], strides = [1, 1]} : vector<8x128xf32> to vector<8x32xf32>
    %45 = arith.mulf %42, %12 : vector<8x32xf32>
    %46 = arith.mulf %41, %43 : vector<8x32xf32>
    %47 = arith.addf %45, %46 : vector<8x32xf32>
    %48 = math.tanh %47 : vector<8x32xf32>
    %49 = arith.mulf %44, %48 : vector<8x32xf32>
    %50 = vector.extract_strided_slice %5 {offsets = [8, 0], sizes = [8, 128], strides = [1, 1]} : vector<64x128xf32> to vector<8x128xf32>
    %cst_19 = arith.constant dense<0.000000e+00> : vector<8x128xf32>
    %51 = tpu.matmul %30, %6, %cst_19 {dimension_numbers = #tpu.dot_dimension_numbers<[1], [0], [0], [1], [0, 0, 1, 1], [], []>} : vector<8x32xf32>, vector<32x128xf32>, vector<8x128xf32> -> vector<8x128xf32>
    %52 = arith.addf %50, %51 : vector<8x128xf32>
    %53 = arith.negf %52 : vector<8x128xf32>
    %54 = math.exp %53 : vector<8x128xf32>
    %cst_20 = arith.constant 1.000000e+00 : f32
    %55 = vector.broadcast %cst_20 : f32 to vector<8x128xf32>
    %56 = arith.addf %55, %54 : vector<8x128xf32>
    %57 = arith.divf %55, %56 : vector<8x128xf32>
    %58 = math.tanh %52 : vector<8x128xf32>
    %59 = vector.extract_strided_slice %57 {offsets = [0, 0], sizes = [8, 32], strides = [1, 1]} : vector<8x128xf32> to vector<8x32xf32>
    %60 = vector.extract_strided_slice %57 {offsets = [0, 32], sizes = [8, 32], strides = [1, 1]} : vector<8x128xf32> to vector<8x32xf32>
    %61 = vector.extract_strided_slice %58 {offsets = [0, 64], sizes = [8, 32], strides = [1, 1]} : vector<8x128xf32> to vector<8x32xf32>
    %62 = vector.extract_strided_slice %57 {offsets = [0, 96], sizes = [8, 32], strides = [1, 1]} : vector<8x128xf32> to vector<8x32xf32>
    %63 = arith.mulf %60, %28 : vector<8x32xf32>
    %64 = arith.mulf %59, %61 : vector<8x32xf32>
    %65 = arith.addf %63, %64 : vector<8x32xf32>
    %66 = math.tanh %65 : vector<8x32xf32>
    %67 = arith.mulf %62, %66 : vector<8x32xf32>
    %68 = tpu.concatenate %67, %49 in 1 : vector<8x32xf32>, vector<8x32xf32> -> vector<8x64xf32>
    %cst_21 = arith.constant dense<0.000000e+00> : vector<8x128xf32>
    %69 = tpu.matmul %68, %7, %cst_21 {dimension_numbers = #tpu.dot_dimension_numbers<[1], [0], [0], [1], [0, 0, 1, 1], [], []>} : vector<8x64xf32>, vector<64x128xf32>, vector<8x128xf32> -> vector<8x128xf32>
    %70 = vector.broadcast %8 : vector<1x128xf32> to vector<8x128xf32>
    %71 = arith.addf %69, %70 : vector<8x128xf32>
    %72 = arith.negf %71 : vector<8x128xf32>
    %73 = math.exp %72 : vector<8x128xf32>
    %cst_22 = arith.constant 1.000000e+00 : f32
    %74 = vector.broadcast %cst_22 : f32 to vector<8x128xf32>
    %75 = arith.addf %74, %73 : vector<8x128xf32>
    %76 = arith.divf %74, %75 : vector<8x128xf32>
    %77 = math.tanh %71 : vector<8x128xf32>
    %78 = vector.extract_strided_slice %76 {offsets = [0, 0], sizes = [8, 32], strides = [1, 1]} : vector<8x128xf32> to vector<8x32xf32>
    %79 = vector.extract_strided_slice %76 {offsets = [0, 32], sizes = [8, 32], strides = [1, 1]} : vector<8x128xf32> to vector<8x32xf32>
    %80 = vector.extract_strided_slice %77 {offsets = [0, 64], sizes = [8, 32], strides = [1, 1]} : vector<8x128xf32> to vector<8x32xf32>
    %81 = vector.extract_strided_slice %76 {offsets = [0, 96], sizes = [8, 32], strides = [1, 1]} : vector<8x128xf32> to vector<8x32xf32>
    %82 = arith.mulf %79, %47 : vector<8x32xf32>
    %83 = arith.mulf %78, %80 : vector<8x32xf32>
    %84 = arith.addf %82, %83 : vector<8x32xf32>
    %85 = math.tanh %84 : vector<8x32xf32>
    %86 = arith.mulf %81, %85 : vector<8x32xf32>
    %87 = vector.extract_strided_slice %5 {offsets = [16, 0], sizes = [8, 128], strides = [1, 1]} : vector<64x128xf32> to vector<8x128xf32>
    %cst_23 = arith.constant dense<0.000000e+00> : vector<8x128xf32>
    %88 = tpu.matmul %67, %6, %cst_23 {dimension_numbers = #tpu.dot_dimension_numbers<[1], [0], [0], [1], [0, 0, 1, 1], [], []>} : vector<8x32xf32>, vector<32x128xf32>, vector<8x128xf32> -> vector<8x128xf32>
    %89 = arith.addf %87, %88 : vector<8x128xf32>
    %90 = arith.negf %89 : vector<8x128xf32>
    %91 = math.exp %90 : vector<8x128xf32>
    %cst_24 = arith.constant 1.000000e+00 : f32
    %92 = vector.broadcast %cst_24 : f32 to vector<8x128xf32>
    %93 = arith.addf %92, %91 : vector<8x128xf32>
    %94 = arith.divf %92, %93 : vector<8x128xf32>
    %95 = math.tanh %89 : vector<8x128xf32>
    %96 = vector.extract_strided_slice %94 {offsets = [0, 0], sizes = [8, 32], strides = [1, 1]} : vector<8x128xf32> to vector<8x32xf32>
    %97 = vector.extract_strided_slice %94 {offsets = [0, 32], sizes = [8, 32], strides = [1, 1]} : vector<8x128xf32> to vector<8x32xf32>
    %98 = vector.extract_strided_slice %95 {offsets = [0, 64], sizes = [8, 32], strides = [1, 1]} : vector<8x128xf32> to vector<8x32xf32>
    %99 = vector.extract_strided_slice %94 {offsets = [0, 96], sizes = [8, 32], strides = [1, 1]} : vector<8x128xf32> to vector<8x32xf32>
    %100 = arith.mulf %97, %65 : vector<8x32xf32>
    %101 = arith.mulf %96, %98 : vector<8x32xf32>
    %102 = arith.addf %100, %101 : vector<8x32xf32>
    %103 = math.tanh %102 : vector<8x32xf32>
    %104 = arith.mulf %99, %103 : vector<8x32xf32>
    %105 = tpu.concatenate %104, %86 in 1 : vector<8x32xf32>, vector<8x32xf32> -> vector<8x64xf32>
    %cst_25 = arith.constant dense<0.000000e+00> : vector<8x128xf32>
    %106 = tpu.matmul %105, %7, %cst_25 {dimension_numbers = #tpu.dot_dimension_numbers<[1], [0], [0], [1], [0, 0, 1, 1], [], []>} : vector<8x64xf32>, vector<64x128xf32>, vector<8x128xf32> -> vector<8x128xf32>
    %107 = vector.broadcast %8 : vector<1x128xf32> to vector<8x128xf32>
    %108 = arith.addf %106, %107 : vector<8x128xf32>
    %109 = arith.negf %108 : vector<8x128xf32>
    %110 = math.exp %109 : vector<8x128xf32>
    %cst_26 = arith.constant 1.000000e+00 : f32
    %111 = vector.broadcast %cst_26 : f32 to vector<8x128xf32>
    %112 = arith.addf %111, %110 : vector<8x128xf32>
    %113 = arith.divf %111, %112 : vector<8x128xf32>
    %114 = math.tanh %108 : vector<8x128xf32>
    %115 = vector.extract_strided_slice %113 {offsets = [0, 0], sizes = [8, 32], strides = [1, 1]} : vector<8x128xf32> to vector<8x32xf32>
    %116 = vector.extract_strided_slice %113 {offsets = [0, 32], sizes = [8, 32], strides = [1, 1]} : vector<8x128xf32> to vector<8x32xf32>
    %117 = vector.extract_strided_slice %114 {offsets = [0, 64], sizes = [8, 32], strides = [1, 1]} : vector<8x128xf32> to vector<8x32xf32>
    %118 = vector.extract_strided_slice %113 {offsets = [0, 96], sizes = [8, 32], strides = [1, 1]} : vector<8x128xf32> to vector<8x32xf32>
    %119 = arith.mulf %116, %84 : vector<8x32xf32>
    %120 = arith.mulf %115, %117 : vector<8x32xf32>
    %121 = arith.addf %119, %120 : vector<8x32xf32>
    %122 = math.tanh %121 : vector<8x32xf32>
    %123 = arith.mulf %118, %122 : vector<8x32xf32>
    %124 = vector.extract_strided_slice %5 {offsets = [24, 0], sizes = [8, 128], strides = [1, 1]} : vector<64x128xf32> to vector<8x128xf32>
    %cst_27 = arith.constant dense<0.000000e+00> : vector<8x128xf32>
    %125 = tpu.matmul %104, %6, %cst_27 {dimension_numbers = #tpu.dot_dimension_numbers<[1], [0], [0], [1], [0, 0, 1, 1], [], []>} : vector<8x32xf32>, vector<32x128xf32>, vector<8x128xf32> -> vector<8x128xf32>
    %126 = arith.addf %124, %125 : vector<8x128xf32>
    %127 = arith.negf %126 : vector<8x128xf32>
    %128 = math.exp %127 : vector<8x128xf32>
    %cst_28 = arith.constant 1.000000e+00 : f32
    %129 = vector.broadcast %cst_28 : f32 to vector<8x128xf32>
    %130 = arith.addf %129, %128 : vector<8x128xf32>
    %131 = arith.divf %129, %130 : vector<8x128xf32>
    %132 = math.tanh %126 : vector<8x128xf32>
    %133 = vector.extract_strided_slice %131 {offsets = [0, 0], sizes = [8, 32], strides = [1, 1]} : vector<8x128xf32> to vector<8x32xf32>
    %134 = vector.extract_strided_slice %131 {offsets = [0, 32], sizes = [8, 32], strides = [1, 1]} : vector<8x128xf32> to vector<8x32xf32>
    %135 = vector.extract_strided_slice %132 {offsets = [0, 64], sizes = [8, 32], strides = [1, 1]} : vector<8x128xf32> to vector<8x32xf32>
    %136 = vector.extract_strided_slice %131 {offsets = [0, 96], sizes = [8, 32], strides = [1, 1]} : vector<8x128xf32> to vector<8x32xf32>
    %137 = arith.mulf %134, %102 : vector<8x32xf32>
    %138 = arith.mulf %133, %135 : vector<8x32xf32>
    %139 = arith.addf %137, %138 : vector<8x32xf32>
    %140 = math.tanh %139 : vector<8x32xf32>
    %141 = arith.mulf %136, %140 : vector<8x32xf32>
    %142 = tpu.concatenate %141, %123 in 1 : vector<8x32xf32>, vector<8x32xf32> -> vector<8x64xf32>
    %cst_29 = arith.constant dense<0.000000e+00> : vector<8x128xf32>
    %143 = tpu.matmul %142, %7, %cst_29 {dimension_numbers = #tpu.dot_dimension_numbers<[1], [0], [0], [1], [0, 0, 1, 1], [], []>} : vector<8x64xf32>, vector<64x128xf32>, vector<8x128xf32> -> vector<8x128xf32>
    %144 = vector.broadcast %8 : vector<1x128xf32> to vector<8x128xf32>
    %145 = arith.addf %143, %144 : vector<8x128xf32>
    %146 = arith.negf %145 : vector<8x128xf32>
    %147 = math.exp %146 : vector<8x128xf32>
    %cst_30 = arith.constant 1.000000e+00 : f32
    %148 = vector.broadcast %cst_30 : f32 to vector<8x128xf32>
    %149 = arith.addf %148, %147 : vector<8x128xf32>
    %150 = arith.divf %148, %149 : vector<8x128xf32>
    %151 = math.tanh %145 : vector<8x128xf32>
    %152 = vector.extract_strided_slice %150 {offsets = [0, 0], sizes = [8, 32], strides = [1, 1]} : vector<8x128xf32> to vector<8x32xf32>
    %153 = vector.extract_strided_slice %150 {offsets = [0, 32], sizes = [8, 32], strides = [1, 1]} : vector<8x128xf32> to vector<8x32xf32>
    %154 = vector.extract_strided_slice %151 {offsets = [0, 64], sizes = [8, 32], strides = [1, 1]} : vector<8x128xf32> to vector<8x32xf32>
    %155 = vector.extract_strided_slice %150 {offsets = [0, 96], sizes = [8, 32], strides = [1, 1]} : vector<8x128xf32> to vector<8x32xf32>
    %156 = arith.mulf %153, %121 : vector<8x32xf32>
    %157 = arith.mulf %152, %154 : vector<8x32xf32>
    %158 = arith.addf %156, %157 : vector<8x32xf32>
    %159 = math.tanh %158 : vector<8x32xf32>
    %160 = arith.mulf %155, %159 : vector<8x32xf32>
    %161 = vector.extract_strided_slice %5 {offsets = [32, 0], sizes = [8, 128], strides = [1, 1]} : vector<64x128xf32> to vector<8x128xf32>
    %cst_31 = arith.constant dense<0.000000e+00> : vector<8x128xf32>
    %162 = tpu.matmul %141, %6, %cst_31 {dimension_numbers = #tpu.dot_dimension_numbers<[1], [0], [0], [1], [0, 0, 1, 1], [], []>} : vector<8x32xf32>, vector<32x128xf32>, vector<8x128xf32> -> vector<8x128xf32>
    %163 = arith.addf %161, %162 : vector<8x128xf32>
    %164 = arith.negf %163 : vector<8x128xf32>
    %165 = math.exp %164 : vector<8x128xf32>
    %cst_32 = arith.constant 1.000000e+00 : f32
    %166 = vector.broadcast %cst_32 : f32 to vector<8x128xf32>
    %167 = arith.addf %166, %165 : vector<8x128xf32>
    %168 = arith.divf %166, %167 : vector<8x128xf32>
    %169 = math.tanh %163 : vector<8x128xf32>
    %170 = vector.extract_strided_slice %168 {offsets = [0, 0], sizes = [8, 32], strides = [1, 1]} : vector<8x128xf32> to vector<8x32xf32>
    %171 = vector.extract_strided_slice %168 {offsets = [0, 32], sizes = [8, 32], strides = [1, 1]} : vector<8x128xf32> to vector<8x32xf32>
    %172 = vector.extract_strided_slice %169 {offsets = [0, 64], sizes = [8, 32], strides = [1, 1]} : vector<8x128xf32> to vector<8x32xf32>
    %173 = vector.extract_strided_slice %168 {offsets = [0, 96], sizes = [8, 32], strides = [1, 1]} : vector<8x128xf32> to vector<8x32xf32>
    %174 = arith.mulf %171, %139 : vector<8x32xf32>
    %175 = arith.mulf %170, %172 : vector<8x32xf32>
    %176 = arith.addf %174, %175 : vector<8x32xf32>
    %177 = math.tanh %176 : vector<8x32xf32>
    %178 = arith.mulf %173, %177 : vector<8x32xf32>
    %179 = tpu.concatenate %178, %160 in 1 : vector<8x32xf32>, vector<8x32xf32> -> vector<8x64xf32>
    %cst_33 = arith.constant dense<0.000000e+00> : vector<8x128xf32>
    %180 = tpu.matmul %179, %7, %cst_33 {dimension_numbers = #tpu.dot_dimension_numbers<[1], [0], [0], [1], [0, 0, 1, 1], [], []>} : vector<8x64xf32>, vector<64x128xf32>, vector<8x128xf32> -> vector<8x128xf32>
    %181 = vector.broadcast %8 : vector<1x128xf32> to vector<8x128xf32>
    %182 = arith.addf %180, %181 : vector<8x128xf32>
    %183 = arith.negf %182 : vector<8x128xf32>
    %184 = math.exp %183 : vector<8x128xf32>
    %cst_34 = arith.constant 1.000000e+00 : f32
    %185 = vector.broadcast %cst_34 : f32 to vector<8x128xf32>
    %186 = arith.addf %185, %184 : vector<8x128xf32>
    %187 = arith.divf %185, %186 : vector<8x128xf32>
    %188 = math.tanh %182 : vector<8x128xf32>
    %189 = vector.extract_strided_slice %187 {offsets = [0, 0], sizes = [8, 32], strides = [1, 1]} : vector<8x128xf32> to vector<8x32xf32>
    %190 = vector.extract_strided_slice %187 {offsets = [0, 32], sizes = [8, 32], strides = [1, 1]} : vector<8x128xf32> to vector<8x32xf32>
    %191 = vector.extract_strided_slice %188 {offsets = [0, 64], sizes = [8, 32], strides = [1, 1]} : vector<8x128xf32> to vector<8x32xf32>
    %192 = vector.extract_strided_slice %187 {offsets = [0, 96], sizes = [8, 32], strides = [1, 1]} : vector<8x128xf32> to vector<8x32xf32>
    %193 = arith.mulf %190, %158 : vector<8x32xf32>
    %194 = arith.mulf %189, %191 : vector<8x32xf32>
    %195 = arith.addf %193, %194 : vector<8x32xf32>
    %196 = math.tanh %195 : vector<8x32xf32>
    %197 = arith.mulf %192, %196 : vector<8x32xf32>
    %198 = vector.extract_strided_slice %5 {offsets = [40, 0], sizes = [8, 128], strides = [1, 1]} : vector<64x128xf32> to vector<8x128xf32>
    %cst_35 = arith.constant dense<0.000000e+00> : vector<8x128xf32>
    %199 = tpu.matmul %178, %6, %cst_35 {dimension_numbers = #tpu.dot_dimension_numbers<[1], [0], [0], [1], [0, 0, 1, 1], [], []>} : vector<8x32xf32>, vector<32x128xf32>, vector<8x128xf32> -> vector<8x128xf32>
    %200 = arith.addf %198, %199 : vector<8x128xf32>
    %201 = arith.negf %200 : vector<8x128xf32>
    %202 = math.exp %201 : vector<8x128xf32>
    %cst_36 = arith.constant 1.000000e+00 : f32
    %203 = vector.broadcast %cst_36 : f32 to vector<8x128xf32>
    %204 = arith.addf %203, %202 : vector<8x128xf32>
    %205 = arith.divf %203, %204 : vector<8x128xf32>
    %206 = math.tanh %200 : vector<8x128xf32>
    %207 = vector.extract_strided_slice %205 {offsets = [0, 0], sizes = [8, 32], strides = [1, 1]} : vector<8x128xf32> to vector<8x32xf32>
    %208 = vector.extract_strided_slice %205 {offsets = [0, 32], sizes = [8, 32], strides = [1, 1]} : vector<8x128xf32> to vector<8x32xf32>
    %209 = vector.extract_strided_slice %206 {offsets = [0, 64], sizes = [8, 32], strides = [1, 1]} : vector<8x128xf32> to vector<8x32xf32>
    %210 = vector.extract_strided_slice %205 {offsets = [0, 96], sizes = [8, 32], strides = [1, 1]} : vector<8x128xf32> to vector<8x32xf32>
    %211 = arith.mulf %208, %176 : vector<8x32xf32>
    %212 = arith.mulf %207, %209 : vector<8x32xf32>
    %213 = arith.addf %211, %212 : vector<8x32xf32>
    %214 = math.tanh %213 : vector<8x32xf32>
    %215 = arith.mulf %210, %214 : vector<8x32xf32>
    %216 = tpu.concatenate %215, %197 in 1 : vector<8x32xf32>, vector<8x32xf32> -> vector<8x64xf32>
    %cst_37 = arith.constant dense<0.000000e+00> : vector<8x128xf32>
    %217 = tpu.matmul %216, %7, %cst_37 {dimension_numbers = #tpu.dot_dimension_numbers<[1], [0], [0], [1], [0, 0, 1, 1], [], []>} : vector<8x64xf32>, vector<64x128xf32>, vector<8x128xf32> -> vector<8x128xf32>
    %218 = vector.broadcast %8 : vector<1x128xf32> to vector<8x128xf32>
    %219 = arith.addf %217, %218 : vector<8x128xf32>
    %220 = arith.negf %219 : vector<8x128xf32>
    %221 = math.exp %220 : vector<8x128xf32>
    %cst_38 = arith.constant 1.000000e+00 : f32
    %222 = vector.broadcast %cst_38 : f32 to vector<8x128xf32>
    %223 = arith.addf %222, %221 : vector<8x128xf32>
    %224 = arith.divf %222, %223 : vector<8x128xf32>
    %225 = math.tanh %219 : vector<8x128xf32>
    %226 = vector.extract_strided_slice %224 {offsets = [0, 0], sizes = [8, 32], strides = [1, 1]} : vector<8x128xf32> to vector<8x32xf32>
    %227 = vector.extract_strided_slice %224 {offsets = [0, 32], sizes = [8, 32], strides = [1, 1]} : vector<8x128xf32> to vector<8x32xf32>
    %228 = vector.extract_strided_slice %225 {offsets = [0, 64], sizes = [8, 32], strides = [1, 1]} : vector<8x128xf32> to vector<8x32xf32>
    %229 = vector.extract_strided_slice %224 {offsets = [0, 96], sizes = [8, 32], strides = [1, 1]} : vector<8x128xf32> to vector<8x32xf32>
    %230 = arith.mulf %227, %195 : vector<8x32xf32>
    %231 = arith.mulf %226, %228 : vector<8x32xf32>
    %232 = arith.addf %230, %231 : vector<8x32xf32>
    %233 = math.tanh %232 : vector<8x32xf32>
    %234 = arith.mulf %229, %233 : vector<8x32xf32>
    %235 = vector.extract_strided_slice %5 {offsets = [48, 0], sizes = [8, 128], strides = [1, 1]} : vector<64x128xf32> to vector<8x128xf32>
    %cst_39 = arith.constant dense<0.000000e+00> : vector<8x128xf32>
    %236 = tpu.matmul %215, %6, %cst_39 {dimension_numbers = #tpu.dot_dimension_numbers<[1], [0], [0], [1], [0, 0, 1, 1], [], []>} : vector<8x32xf32>, vector<32x128xf32>, vector<8x128xf32> -> vector<8x128xf32>
    %237 = arith.addf %235, %236 : vector<8x128xf32>
    %238 = arith.negf %237 : vector<8x128xf32>
    %239 = math.exp %238 : vector<8x128xf32>
    %cst_40 = arith.constant 1.000000e+00 : f32
    %240 = vector.broadcast %cst_40 : f32 to vector<8x128xf32>
    %241 = arith.addf %240, %239 : vector<8x128xf32>
    %242 = arith.divf %240, %241 : vector<8x128xf32>
    %243 = math.tanh %237 : vector<8x128xf32>
    %244 = vector.extract_strided_slice %242 {offsets = [0, 0], sizes = [8, 32], strides = [1, 1]} : vector<8x128xf32> to vector<8x32xf32>
    %245 = vector.extract_strided_slice %242 {offsets = [0, 32], sizes = [8, 32], strides = [1, 1]} : vector<8x128xf32> to vector<8x32xf32>
    %246 = vector.extract_strided_slice %243 {offsets = [0, 64], sizes = [8, 32], strides = [1, 1]} : vector<8x128xf32> to vector<8x32xf32>
    %247 = vector.extract_strided_slice %242 {offsets = [0, 96], sizes = [8, 32], strides = [1, 1]} : vector<8x128xf32> to vector<8x32xf32>
    %248 = arith.mulf %245, %213 : vector<8x32xf32>
    %249 = arith.mulf %244, %246 : vector<8x32xf32>
    %250 = arith.addf %248, %249 : vector<8x32xf32>
    %251 = math.tanh %250 : vector<8x32xf32>
    %252 = arith.mulf %247, %251 : vector<8x32xf32>
    %253 = tpu.concatenate %252, %234 in 1 : vector<8x32xf32>, vector<8x32xf32> -> vector<8x64xf32>
    %cst_41 = arith.constant dense<0.000000e+00> : vector<8x128xf32>
    %254 = tpu.matmul %253, %7, %cst_41 {dimension_numbers = #tpu.dot_dimension_numbers<[1], [0], [0], [1], [0, 0, 1, 1], [], []>} : vector<8x64xf32>, vector<64x128xf32>, vector<8x128xf32> -> vector<8x128xf32>
    %255 = vector.broadcast %8 : vector<1x128xf32> to vector<8x128xf32>
    %256 = arith.addf %254, %255 : vector<8x128xf32>
    %257 = arith.negf %256 : vector<8x128xf32>
    %258 = math.exp %257 : vector<8x128xf32>
    %cst_42 = arith.constant 1.000000e+00 : f32
    %259 = vector.broadcast %cst_42 : f32 to vector<8x128xf32>
    %260 = arith.addf %259, %258 : vector<8x128xf32>
    %261 = arith.divf %259, %260 : vector<8x128xf32>
    %262 = math.tanh %256 : vector<8x128xf32>
    %263 = vector.extract_strided_slice %261 {offsets = [0, 0], sizes = [8, 32], strides = [1, 1]} : vector<8x128xf32> to vector<8x32xf32>
    %264 = vector.extract_strided_slice %261 {offsets = [0, 32], sizes = [8, 32], strides = [1, 1]} : vector<8x128xf32> to vector<8x32xf32>
    %265 = vector.extract_strided_slice %262 {offsets = [0, 64], sizes = [8, 32], strides = [1, 1]} : vector<8x128xf32> to vector<8x32xf32>
    %266 = vector.extract_strided_slice %261 {offsets = [0, 96], sizes = [8, 32], strides = [1, 1]} : vector<8x128xf32> to vector<8x32xf32>
    %267 = arith.mulf %264, %232 : vector<8x32xf32>
    %268 = arith.mulf %263, %265 : vector<8x32xf32>
    %269 = arith.addf %267, %268 : vector<8x32xf32>
    %270 = math.tanh %269 : vector<8x32xf32>
    %271 = arith.mulf %266, %270 : vector<8x32xf32>
    %272 = vector.extract_strided_slice %5 {offsets = [56, 0], sizes = [8, 128], strides = [1, 1]} : vector<64x128xf32> to vector<8x128xf32>
    %cst_43 = arith.constant dense<0.000000e+00> : vector<8x128xf32>
    %273 = tpu.matmul %252, %6, %cst_43 {dimension_numbers = #tpu.dot_dimension_numbers<[1], [0], [0], [1], [0, 0, 1, 1], [], []>} : vector<8x32xf32>, vector<32x128xf32>, vector<8x128xf32> -> vector<8x128xf32>
    %274 = arith.addf %272, %273 : vector<8x128xf32>
    %275 = arith.negf %274 : vector<8x128xf32>
    %276 = math.exp %275 : vector<8x128xf32>
    %cst_44 = arith.constant 1.000000e+00 : f32
    %277 = vector.broadcast %cst_44 : f32 to vector<8x128xf32>
    %278 = arith.addf %277, %276 : vector<8x128xf32>
    %279 = arith.divf %277, %278 : vector<8x128xf32>
    %280 = math.tanh %274 : vector<8x128xf32>
    %281 = vector.extract_strided_slice %279 {offsets = [0, 0], sizes = [8, 32], strides = [1, 1]} : vector<8x128xf32> to vector<8x32xf32>
    %282 = vector.extract_strided_slice %279 {offsets = [0, 32], sizes = [8, 32], strides = [1, 1]} : vector<8x128xf32> to vector<8x32xf32>
    %283 = vector.extract_strided_slice %280 {offsets = [0, 64], sizes = [8, 32], strides = [1, 1]} : vector<8x128xf32> to vector<8x32xf32>
    %284 = vector.extract_strided_slice %279 {offsets = [0, 96], sizes = [8, 32], strides = [1, 1]} : vector<8x128xf32> to vector<8x32xf32>
    %285 = arith.mulf %282, %250 : vector<8x32xf32>
    %286 = arith.mulf %281, %283 : vector<8x32xf32>
    %287 = arith.addf %285, %286 : vector<8x32xf32>
    %288 = math.tanh %287 : vector<8x32xf32>
    %289 = arith.mulf %284, %288 : vector<8x32xf32>
    %290 = tpu.concatenate %289, %271 in 1 : vector<8x32xf32>, vector<8x32xf32> -> vector<8x64xf32>
    %cst_45 = arith.constant dense<0.000000e+00> : vector<8x128xf32>
    %291 = tpu.matmul %290, %7, %cst_45 {dimension_numbers = #tpu.dot_dimension_numbers<[1], [0], [0], [1], [0, 0, 1, 1], [], []>} : vector<8x64xf32>, vector<64x128xf32>, vector<8x128xf32> -> vector<8x128xf32>
    %292 = vector.broadcast %8 : vector<1x128xf32> to vector<8x128xf32>
    %293 = arith.addf %291, %292 : vector<8x128xf32>
    %294 = arith.negf %293 : vector<8x128xf32>
    %295 = math.exp %294 : vector<8x128xf32>
    %cst_46 = arith.constant 1.000000e+00 : f32
    %296 = vector.broadcast %cst_46 : f32 to vector<8x128xf32>
    %297 = arith.addf %296, %295 : vector<8x128xf32>
    %298 = arith.divf %296, %297 : vector<8x128xf32>
    %299 = math.tanh %293 : vector<8x128xf32>
    %300 = vector.extract_strided_slice %298 {offsets = [0, 0], sizes = [8, 32], strides = [1, 1]} : vector<8x128xf32> to vector<8x32xf32>
    %301 = vector.extract_strided_slice %298 {offsets = [0, 32], sizes = [8, 32], strides = [1, 1]} : vector<8x128xf32> to vector<8x32xf32>
    %302 = vector.extract_strided_slice %299 {offsets = [0, 64], sizes = [8, 32], strides = [1, 1]} : vector<8x128xf32> to vector<8x32xf32>
    %303 = vector.extract_strided_slice %298 {offsets = [0, 96], sizes = [8, 32], strides = [1, 1]} : vector<8x128xf32> to vector<8x32xf32>
    %304 = arith.mulf %301, %269 : vector<8x32xf32>
    %305 = arith.mulf %300, %302 : vector<8x32xf32>
    %306 = arith.addf %304, %305 : vector<8x32xf32>
    %307 = math.tanh %306 : vector<8x32xf32>
    %308 = arith.mulf %303, %307 : vector<8x32xf32>
    %c0_47 = arith.constant 0 : index
    %c0_48 = arith.constant 0 : index
    %309 = vector.load %arg6[%c0_47, %c0_48] : memref<32x128xf32, #tpu.memory_space<vmem>>, vector<32x128xf32>
    %cst_49 = arith.constant dense<0.000000e+00> : vector<8x128xf32>
    %310 = tpu.matmul %308, %309, %cst_49 {dimension_numbers = #tpu.dot_dimension_numbers<[1], [0], [0], [1], [0, 0, 1, 1], [], []>} : vector<8x32xf32>, vector<32x128xf32>, vector<8x128xf32> -> vector<8x128xf32>
    %c0_50 = arith.constant 0 : index
    %c0_51 = arith.constant 0 : index
    %311 = vector.load %arg7[%c0_50, %c0_51] : memref<1x128xf32, #tpu.memory_space<vmem>>, vector<1x128xf32>
    %312 = vector.broadcast %311 : vector<1x128xf32> to vector<8x128xf32>
    %313 = arith.addf %310, %312 : vector<8x128xf32>
    %c0_52 = arith.constant 0 : index
    %c0_53 = arith.constant 0 : index
    %314 = vector.load %arg8[%c0_52, %c0_53] : memref<8x128xf32, #tpu.memory_space<vmem>>, vector<8x128xf32>
    tpu.vector_store %arg8[%c0_52, %c0_53], %313 {strides = array<i32>} : memref<8x128xf32, #tpu.memory_space<vmem>>, vector<8x128xf32>,
    return
  }
}

</mosaic_0001>

<llo_original>
// kernel: tpu_custom_call.1
$region0: #{tpu_custom_call.1}
  #allocation0 [shape = 'u32[]', space=smem, size = 0x4, offset = 0x4, fixed_abs, tag = 'smem constant byte address 0x4 - core index']
  #allocation1 [shape = 'u32[144,128]{1,0:T(1,128)}', space=vmem, size = 0x12000, scoped, tag = 'internal scratch']
  %s0 = inlined_call_operand.vmem [shape: f32[64,16], index: 0, kind: input, shape index: {}]
  %s1 = inlined_call_operand.vmem [shape: f32[16,128], index: 1, kind: input, shape index: {}]
  %s2 = inlined_call_operand.hbm [shape: f32[32,128], index: 2, kind: input, shape index: {}]
  %s3 = inlined_call_operand.vmem [shape: f32[1,128], index: 3, kind: input, shape index: {}]
  %s4 = inlined_call_operand.vmem [shape: f32[64,128], index: 4, kind: input, shape index: {}]
  %s5 = inlined_call_operand.vmem [shape: f32[1,128], index: 5, kind: input, shape index: {}]
  %s6 = inlined_call_operand.hbm [shape: f32[32,128], index: 6, kind: input, shape index: {}]
  %s7 = inlined_call_operand.vmem [shape: f32[1,128], index: 7, kind: input, shape index: {}]
  %s8 = inlined_call_operand.hbm [shape: f32[8,128], index: 8, kind: output, shape index: {}]
  %s9 = sld [smem:[#allocation0]]
  $region50: #{tpu_custom_call.1} parent=0
    _
  %s11 = ssub.s32 1, %s9
  %s12 = scalar_select 0, %s11, %s9
  $region1: #{tpu_custom_call.1} parent=0
    #allocation2 [shape = 'u8[16384]{0}', space=vmem, size = 0x4000, scoped, tag = 'input window, operand 2, single buffered']
    #allocation3 [shape = 's32[1]{0}', space=sflag, size = 0x4, scoped, tag = 'scoped memory for tpu_custom_call.1']
    #allocation4 [shape = 's32[1]{0}', space=sflag, size = 0x4, scoped, tag = 'scoped memory for tpu_custom_call.1']
    #allocation5 [shape = 'u8[16384]{0}', space=vmem, size = 0x4000, scoped, tag = 'input window, operand 6, single buffered']
    #allocation6 [shape = 's32[1]{0}', space=sflag, size = 0x4, scoped, tag = 'scoped memory for tpu_custom_call.1']
    #allocation7 [shape = 'u8[4096]{0}', space=vmem, size = 0x1000, scoped, tag = 'output window, operand 0, single buffered']
    %13 = vsyncpa [#allocation3], 0
    %14 = vsyncpa [#allocation6], 0
    %15 = vsyncpa [#allocation4], 0
    // Predicated region
    $region2: #{tpu_custom_call.1} parent=1 // pred_check
      _
    $region3: #{tpu_custom_call.1} parent=1 // pred_check_branch
      %17 = sbr.rel (0) target = $region5
    $region4: #{tpu_custom_call.1} parent=1 // pred_region
      _
    $region5: #{tpu_custom_call.1} parent=1 // pred_fallthru
      _
    // Predicated region
    $region6: #{tpu_custom_call.1} parent=1 // pred_check
      _
    $region7: #{tpu_custom_call.1} parent=1 // pred_check_branch
      %19 = sbr.rel (0) target = $region9
    $region8: #{tpu_custom_call.1} parent=1 // pred_region
      _
    $region9: #{tpu_custom_call.1} parent=1 // pred_fallthru
      _
    // Predicated region
    $region10: #{tpu_custom_call.1} parent=1 // pred_check
      _
    $region11: #{tpu_custom_call.1} parent=1 // pred_check_branch
      %21 = sbr.rel (0) target = $region13
    $region12: #{tpu_custom_call.1} parent=1 // pred_region
      %s23 = ssub.s32 512, 512
      %24 = vsyncadd [#allocation3], %s23
      %s25 = sshll.u32 [#allocation2], 4
      %s26 = int_to_ptr.vmem [resolvable:$true] %s25
      %31 = dma.hbm_to_vmem [thread:$0]  %s2, 512, %s26, [#allocation3], 128, 128, 8
    $region13: #{tpu_custom_call.1} parent=1 // pred_fallthru
      _
    // Predicated region
    $region14: #{tpu_custom_call.1} parent=1 // pred_check
      _
    $region15: #{tpu_custom_call.1} parent=1 // pred_check_branch
      %33 = sbr.rel (0) target = $region17
    $region16: #{tpu_custom_call.1} parent=1 // pred_region
      _
    $region17: #{tpu_custom_call.1} parent=1 // pred_fallthru
      _
    // Predicated region
    $region18: #{tpu_custom_call.1} parent=1 // pred_check
      _
    $region19: #{tpu_custom_call.1} parent=1 // pred_check_branch
      %35 = sbr.rel (0) target = $region21
    $region20: #{tpu_custom_call.1} parent=1 // pred_region
      _
    $region21: #{tpu_custom_call.1} parent=1 // pred_fallthru
      _
    // Predicated region
    $region22: #{tpu_custom_call.1} parent=1 // pred_check
      _
    $region23: #{tpu_custom_call.1} parent=1 // pred_check_branch
      %37 = sbr.rel (0) target = $region25
    $region24: #{tpu_custom_call.1} parent=1 // pred_region
      _
    $region25: #{tpu_custom_call.1} parent=1 // pred_fallthru
      _
    // Predicated region
    $region26: #{tpu_custom_call.1} parent=1 // pred_check
      _
    $region27: #{tpu_custom_call.1} parent=1 // pred_check_branch
      %39 = sbr.rel (0) target = $region29
    $region28: #{tpu_custom_call.1} parent=1 // pred_region
      %s41 = ssub.s32 512, 512
      %42 = vsyncadd [#allocation6], %s41
      %s43 = sshll.u32 [#allocation5], 4
      %s44 = int_to_ptr.vmem [resolvable:$true] %s43
      %49 = dma.hbm_to_vmem [thread:$0]  %s6, 512, %s44, [#allocation6], 128, 128, 8
    $region29: #{tpu_custom_call.1} parent=1 // pred_fallthru
      _
    // Predicated region
    $region30: #{tpu_custom_call.1} parent=1 // pred_check
      _
    $region31: #{tpu_custom_call.1} parent=1 // pred_check_branch
      %51 = sbr.rel (0) target = $region33
    $region32: #{tpu_custom_call.1} parent=1 // pred_region
      _
    $region33: #{tpu_custom_call.1} parent=1 // pred_fallthru
      _
    // Predicated region
    $region34: #{tpu_custom_call.1} parent=1 // pred_check
      _
    $region35: #{tpu_custom_call.1} parent=1 // pred_check_branch
      %53 = sbr.rel (0) target = $region37
    $region36: #{tpu_custom_call.1} parent=1 // pred_region
      %54 = dma.done [#allocation3], 512
    $region37: #{tpu_custom_call.1} parent=1 // pred_fallthru
      _
    // Predicated region
    $region38: #{tpu_custom_call.1} parent=1 // pred_check
      _
    $region39: #{tpu_custom_call.1} parent=1 // pred_check_branch
      %56 = sbr.rel (0) target = $region41
    $region40: #{tpu_custom_call.1} parent=1 // pred_region
      %57 = dma.done [#allocation6], 512
    $region41: #{tpu_custom_call.1} parent=1 // pred_fallthru
      _
    %v58 = vld [vmem:[%s0] sm:$0xff]
    %v59 = vld [vmem:[%s0 + $0x8] sm:$0xff]
    %v60 = vld [vmem:[%s0 + $0x10] sm:$0xff]
    %v61 = vld [vmem:[%s0 + $0x18] sm:$0xff]
    %v62 = vld [vmem:[%s0 + $0x20] sm:$0xff]
    %v63 = vld [vmem:[%s0 + $0x28] sm:$0xff]
    %v64 = vld [vmem:[%s0 + $0x30] sm:$0xff]
    %v65 = vld [vmem:[%s0 + $0x38] sm:$0xff]
    %v66 = vld [vmem:[%s1] sm:$0xff]
    %v67 = vld [vmem:[%s1 + $0x8] sm:$0xff]
    %v68 = vld [vmem:[%s3] sm:$0x1]
    %v70 = vlaneseq
    %v71 = vshrl.u32 %v70, 7
    %v72 = vsub.s32 0, %v71
    %v73 = vrot.slane %v68, %v72
    %vm75 = vcmask 130048
    %v77 = vsel %vm75, %v58, 0
    %v80 = vsel %vm75, %v59, 0
    %v83 = vsel %vm75, %v60, 0
    %v86 = vsel %vm75, %v61, 0
    %v89 = vsel %vm75, %v62, 0
    %v92 = vsel %vm75, %v63, 0
    %v95 = vsel %vm75, %v64, 0
    %v98 = vsel %vm75, %v65, 0
    %100 = vmatprep.subr.mxu0 0.0
    %101 = vmatpush1.msra.mxu0 0.0
    %102 = vmatprep.subr.mxu0 0.0
    %103 = vmatpush1.msra.mxu0 0.0
    %104 = vmatprep.subr.mxu0 0.0
    %105 = vmatpush1.msra.mxu0 0.0
    %106 = vmatprep.subr.mxu0 0.0
    %107 = vmatpush1.msra.mxu0 0.0
    %108 = vmatprep.subr.mxu0 0.0
    %109 = vmatpush1.msra.mxu0 0.0
    %110 = vmatprep.subr.mxu0 0.0
    %111 = vmatpush1.msra.mxu0 0.0
    %112 = vmatprep.subr.mxu0 0.0
    %113 = vmatpush1.msra.mxu0 0.0
    %114 = vmatprep.subr.mxu0 0.0
    %115 = vmatpush1.msra.mxu0 0.0
    %116 = vmatprep.subr.mxu0 0.0
    %117 = vmatpush1.msra.mxu0 0.0
    %118 = vmatprep.subr.mxu0 0.0
    %119 = vmatpush1.msra.mxu0 0.0
    %120 = vmatprep.subr.mxu0 0.0
    %121 = vmatpush1.msra.mxu0 0.0
    %122 = vmatprep.subr.mxu0 0.0
    %123 = vmatpush1.msra.mxu0 0.0
    %124 = vmatprep.subr.mxu0 0.0
    %125 = vmatpush1.msra.mxu0 0.0
    %126 = vmatprep.subr.mxu0 0.0
    %127 = vmatpush1.msra.mxu0 0.0
    %128 = vmatprep.subr.mxu0 0.0
    %129 = vmatpush1.msra.mxu0 %v67
    %130 = vmatprep.subr.mxu0 0.0
    %131 = vmatpush1.msra.mxu0 %v66
    %132 = vmatprep.subr.mxu0 0.0
    %133 = vmatpush2.msra.mxu0 0.0
    %134 = vmatprep.subr.mxu0 0.0
    %135 = vmatpush2.msra.mxu0 0.0
    %136 = vmatprep.subr.mxu0 0.0
    %137 = vmatpush2.msra.mxu0 0.0
    %138 = vmatprep.subr.mxu0 0.0
    %139 = vmatpush2.msra.mxu0 0.0
    %140 = vmatprep.subr.mxu0 0.0
    %141 = vmatpush2.msra.mxu0 0.0
    %142 = vmatprep.subr.mxu0 0.0
    %143 = vmatpush2.msra.mxu0 0.0
    %144 = vmatprep.subr.mxu0 0.0
    %145 = vmatpush2.msra.mxu0 0.0
    %146 = vmatprep.subr.mxu0 0.0
    %147 = vmatpush2.msra.mxu0 0.0
    %148 = vmatprep.subr.mxu0 0.0
    %149 = vmatpush2.msra.mxu0 0.0
    %150 = vmatprep.subr.mxu0 0.0
    %151 = vmatpush2.msra.mxu0 0.0
    %152 = vmatprep.subr.mxu0 0.0
    %153 = vmatpush2.msra.mxu0 0.0
    %154 = vmatprep.subr.mxu0 0.0
    %155 = vmatpush2.msra.mxu0 0.0
    %156 = vmatprep.subr.mxu0 0.0
    %157 = vmatpush2.msra.mxu0 0.0
    %158 = vmatprep.subr.mxu0 0.0
    %159 = vmatpush2.msra.mxu0 0.0
    %160 = vmatprep.subr.mxu0 0.0
    %161 = vmatpush2.msra.mxu0 0.0
    %162 = vmatprep.subr.mxu0 0.0
    %163 = vmatpush2.msra.mxu0 0.0
    %164 = vmatprep.mubr.f32.mxu0 0.0
    %165 = vmatmul.mubr.f32.gmra.mxu0 %v77
    %v166 = vpop.f32.mrf.mxu0
    %v167 = vadd.f32 %v73, %v166
    %v168 = vpop.f32.mrf.mxu0
    %169 = vmatprep.mubr.f32.mxu0 0.0
    %170 = vmatmul.mubr.f32.gmra.mxu0 %v80
    %v171 = vpop.f32.mrf.mxu0
    %v172 = vadd.f32 %v73, %v171
    %v173 = vpop.f32.mrf.mxu0
    %174 = vmatprep.mubr.f32.mxu0 0.0
    %175 = vmatmul.mubr.f32.gmra.mxu0 %v83
    %v176 = vpop.f32.mrf.mxu0
    %v177 = vadd.f32 %v73, %v176
    %v178 = vpop.f32.mrf.mxu0
    %179 = vmatprep.mubr.f32.mxu0 0.0
    %180 = vmatmul.mubr.f32.gmra.mxu0 %v86
    %v181 = vpop.f32.mrf.mxu0
    %v182 = vadd.f32 %v73, %v181
    %v183 = vpop.f32.mrf.mxu0
    %184 = vmatprep.mubr.f32.mxu0 0.0
    %185 = vmatmul.mubr.f32.gmra.mxu0 %v89
    %v186 = vpop.f32.mrf.mxu0
    %v187 = vadd.f32 %v73, %v186
    %v188 = vpop.f32.mrf.mxu0
    %189 = vmatprep.mubr.f32.mxu0 0.0
    %190 = vmatmul.mubr.f32.gmra.mxu0 %v92
    %v191 = vpop.f32.mrf.mxu0
    %v192 = vadd.f32 %v73, %v191
    %v193 = vpop.f32.mrf.mxu0
    %194 = vmatprep.mubr.f32.mxu0 0.0
    %195 = vmatmul.mubr.f32.gmra.mxu0 %v95
    %v196 = vpop.f32.mrf.mxu0
    %v197 = vadd.f32 %v73, %v196
    %v198 = vpop.f32.mrf.mxu0
    %199 = vmatprep.mubr.f32.mxu0 0.0
    %200 = vmatmul.mubr.f32.gmra.mxu0 %v98
    %v201 = vpop.f32.mrf.mxu0
    %v202 = vadd.f32 %v73, %v201
    %v203 = vpop.f32.mrf.mxu0
    %204 = vdwg.mxu0
    %v205 = vld [vmem:[#allocation2] sm:$0xff]
    %v206 = vld [vmem:[#allocation2 + $0x8] sm:$0xff]
    %v207 = vld [vmem:[#allocation2 + $0x10] sm:$0xff]
    %v208 = vld [vmem:[#allocation2 + $0x18] sm:$0xff]
    %v209 = vld [vmem:[%s4] sm:$0xff]
    %v210 = vld [vmem:[%s4 + $0x8] sm:$0xff]
    %v211 = vld [vmem:[%s4 + $0x10] sm:$0xff]
    %v212 = vld [vmem:[%s4 + $0x18] sm:$0xff]
    %v213 = vld [vmem:[%s4 + $0x20] sm:$0xff]
    %v214 = vld [vmem:[%s4 + $0x28] sm:$0xff]
    %v215 = vld [vmem:[%s4 + $0x30] sm:$0xff]
    %v216 = vld [vmem:[%s4 + $0x38] sm:$0xff]
    %v217 = vld [vmem:[%s5] sm:$0x1]
    %vm218 = vcmask 261120
    %v220 = vsel %vm218, 0.0, 0
    %222 = vmatprep.subr.mxu0 0.0
    %223 = vmatpush1.msra.mxu0 0.0
    %224 = vmatprep.subr.mxu0 0.0
    %225 = vmatpush1.msra.mxu0 0.0
    %226 = vmatprep.subr.mxu0 0.0
    %227 = vmatpush1.msra.mxu0 0.0
    %228 = vmatprep.subr.mxu0 0.0
    %229 = vmatpush1.msra.mxu0 0.0
    %230 = vmatprep.subr.mxu0 0.0
    %231 = vmatpush1.msra.mxu0 0.0
    %232 = vmatprep.subr.mxu0 0.0
    %233 = vmatpush1.msra.mxu0 0.0
    %234 = vmatprep.subr.mxu0 0.0
    %235 = vmatpush1.msra.mxu0 0.0
    %236 = vmatprep.subr.mxu0 0.0
    %237 = vmatpush1.msra.mxu0 0.0
    %238 = vmatprep.subr.mxu0 0.0
    %239 = vmatpush1.msra.mxu0 0.0
    %240 = vmatprep.subr.mxu0 0.0
    %241 = vmatpush1.msra.mxu0 0.0
    %242 = vmatprep.subr.mxu0 0.0
    %243 = vmatpush1.msra.mxu0 0.0
    %244 = vmatprep.subr.mxu0 0.0
    %245 = vmatpush1.msra.mxu0 0.0
    %246 = vmatprep.subr.mxu0 0.0
    %247 = vmatpush1.msra.mxu0 %v208
    %248 = vmatprep.subr.mxu0 0.0
    %249 = vmatpush1.msra.mxu0 %v207
    %250 = vmatprep.subr.mxu0 0.0
    %251 = vmatpush1.msra.mxu0 %v206
    %252 = vmatprep.subr.mxu0 0.0
    %253 = vmatpush1.msra.mxu0 %v205
    %254 = vmatprep.subr.mxu0 0.0
    %255 = vmatpush2.msra.mxu0 0.0
    %256 = vmatprep.subr.mxu0 0.0
    %257 = vmatpush2.msra.mxu0 0.0
    %258 = vmatprep.subr.mxu0 0.0
    %259 = vmatpush2.msra.mxu0 0.0
    %260 = vmatprep.subr.mxu0 0.0
    %261 = vmatpush2.msra.mxu0 0.0
    %262 = vmatprep.subr.mxu0 0.0
    %263 = vmatpush2.msra.mxu0 0.0
    %264 = vmatprep.subr.mxu0 0.0
    %265 = vmatpush2.msra.mxu0 0.0
    %266 = vmatprep.subr.mxu0 0.0
    %267 = vmatpush2.msra.mxu0 0.0
    %268 = vmatprep.subr.mxu0 0.0
    %269 = vmatpush2.msra.mxu0 0.0
    %270 = vmatprep.subr.mxu0 0.0
    %271 = vmatpush2.msra.mxu0 0.0
    %272 = vmatprep.subr.mxu0 0.0
    %273 = vmatpush2.msra.mxu0 0.0
    %274 = vmatprep.subr.mxu0 0.0
    %275 = vmatpush2.msra.mxu0 0.0
    %276 = vmatprep.subr.mxu0 0.0
    %277 = vmatpush2.msra.mxu0 0.0
    %278 = vmatprep.subr.mxu0 0.0
    %279 = vmatpush2.msra.mxu0 0.0
    %280 = vmatprep.subr.mxu0 0.0
    %281 = vmatpush2.msra.mxu0 0.0
    %282 = vmatprep.subr.mxu0 0.0
    %283 = vmatpush2.msra.mxu0 0.0
    %284 = vmatprep.subr.mxu0 0.0
    %285 = vmatpush2.msra.mxu0 0.0
    %286 = vmatprep.mubr.f32.mxu0 0.0
    %287 = vmatmul.mubr.f32.gmra.mxu0 %v220
    %v288 = vpop.f32.mrf.mxu0
    %v289 = vadd.f32 0.0, %v288
    %v290 = vpop.f32.mrf.mxu0
    %291 = vdwg.mxu0
    %v292 = vadd.f32 %v167, %v289
    %v293 = vxor.u32 %v292, 2147483648
    %v294 = vmul.f32 %v293, 1.442695
    %v295 = vpow.pop %v294
    %v296 = vadd.f32 %v295, 1.0
    %v297 = vrcp.pop %v296
    %v298 = vmul.f32 1.0, %v297
    %v299 = vtanh.pop %v292
    %v300 = vmul.f32 %v298, 0.0
    %302 = vrot.lane.b32.xlu0 %v299, 64
    %v303 = vpop.permute.xlu0 %302
    %v305 = vmul.f32 %v298, %v303
    %307 = vrot.lane.b32.xlu0 %v305, 32
    %v308 = vpop.permute.xlu0 %307
    %v310 = vadd.f32 %v300, %v308
    %v311 = vtanh.pop %v310
    %313 = vrot.lane.b32.xlu0 %v311, 64
    %v314 = vpop.permute.xlu0 %313
    %v316 = vmul.f32 %v298, %v314
    %318 = vrot.lane.b32.xlu0 %v316, 32
    %v319 = vpop.permute.xlu0 %318
    %v321 = vsel %vm218, %v319, 0.0
    %v323 = vlaneseq
    %v324 = vshrl.u32 %v323, 7
    %v325 = vsub.s32 0, %v324
    %v326 = vrot.slane %v217, %v325
    %vm328 = vcmask 523264
    %v330 = vsel %vm328, %v321, 0
    %332 = vmatprep.subr.mxu0 0.0
    %333 = vmatpush1.msra.mxu0 0.0
    %334 = vmatprep.subr.mxu0 0.0
    %335 = vmatpush1.msra.mxu0 0.0
    %336 = vmatprep.subr.mxu0 0.0
    %337 = vmatpush1.msra.mxu0 0.0
    %338 = vmatprep.subr.mxu0 0.0
    %339 = vmatpush1.msra.mxu0 0.0
    %340 = vmatprep.subr.mxu0 0.0
    %341 = vmatpush1.msra.mxu0 0.0
    %342 = vmatprep.subr.mxu0 0.0
    %343 = vmatpush1.msra.mxu0 0.0
    %344 = vmatprep.subr.mxu0 0.0
    %345 = vmatpush1.msra.mxu0 0.0
    %346 = vmatprep.subr.mxu0 0.0
    %347 = vmatpush1.msra.mxu0 0.0
    %348 = vmatprep.subr.mxu0 0.0
    %349 = vmatpush1.msra.mxu0 %v216
    %350 = vmatprep.subr.mxu0 0.0
    %351 = vmatpush1.msra.mxu0 %v215
    %352 = vmatprep.subr.mxu0 0.0
    %353 = vmatpush1.msra.mxu0 %v214
    %354 = vmatprep.subr.mxu0 0.0
    %355 = vmatpush1.msra.mxu0 %v213
    %356 = vmatprep.subr.mxu0 0.0
    %357 = vmatpush1.msra.mxu0 %v212
    %358 = vmatprep.subr.mxu0 0.0
    %359 = vmatpush1.msra.mxu0 %v211
    %360 = vmatprep.subr.mxu0 0.0
    %361 = vmatpush1.msra.mxu0 %v210
    %362 = vmatprep.subr.mxu0 0.0
    %363 = vmatpush1.msra.mxu0 %v209
    %364 = vmatprep.subr.mxu0 0.0
    %365 = vmatpush2.msra.mxu0 0.0
    %366 = vmatprep.subr.mxu0 0.0
    %367 = vmatpush2.msra.mxu0 0.0
    %368 = vmatprep.subr.mxu0 0.0
    %369 = vmatpush2.msra.mxu0 0.0
    %370 = vmatprep.subr.mxu0 0.0
    %371 = vmatpush2.msra.mxu0 0.0
    %372 = vmatprep.subr.mxu0 0.0
    %373 = vmatpush2.msra.mxu0 0.0
    %374 = vmatprep.subr.mxu0 0.0
    %375 = vmatpush2.msra.mxu0 0.0
    %376 = vmatprep.subr.mxu0 0.0
    %377 = vmatpush2.msra.mxu0 0.0
    %378 = vmatprep.subr.mxu0 0.0
    %379 = vmatpush2.msra.mxu0 0.0
    %380 = vmatprep.subr.mxu0 0.0
    %381 = vmatpush2.msra.mxu0 0.0
    %382 = vmatprep.subr.mxu0 0.0
    %383 = vmatpush2.msra.mxu0 0.0
    %384 = vmatprep.subr.mxu0 0.0
    %385 = vmatpush2.msra.mxu0 0.0
    %386 = vmatprep.subr.mxu0 0.0
    %387 = vmatpush2.msra.mxu0 0.0
    %388 = vmatprep.subr.mxu0 0.0
    %389 = vmatpush2.msra.mxu0 0.0
    %390 = vmatprep.subr.mxu0 0.0
    %391 = vmatpush2.msra.mxu0 0.0
    %392 = vmatprep.subr.mxu0 0.0
    %393 = vmatpush2.msra.mxu0 0.0
    %394 = vmatprep.subr.mxu0 0.0
    %395 = vmatpush2.msra.mxu0 0.0
    %396 = vmatprep.mubr.f32.mxu0 0.0
    %397 = vmatmul.mubr.f32.gmra.mxu0 %v330
    %v398 = vpop.f32.mrf.mxu0
    %v399 = vadd.f32 %v326, %v398
    %v400 = vpop.f32.mrf.mxu0
    %401 = vdwg.mxu0
    %v402 = vxor.u32 %v399, 2147483648
    %v403 = vmul.f32 %v402, 1.442695
    %v404 = vpow.pop %v403
    %v405 = vadd.f32 %v404, 1.0
    %v406 = vrcp.pop %v405
    %v407 = vmul.f32 1.0, %v406
    %v408 = vtanh.pop %v399
    %v409 = vmul.f32 %v407, 0.0
    %411 = vrot.lane.b32.xlu0 %v408, 64
    %v412 = vpop.permute.xlu0 %411
    %v414 = vmul.f32 %v407, %v412
    %416 = vrot.lane.b32.xlu0 %v414, 32
    %v417 = vpop.permute.xlu0 %416
    %v419 = vadd.f32 %v409, %v417
    %v420 = vtanh.pop %v419
    %422 = vrot.lane.b32.xlu0 %v420, 64
    %v423 = vpop.permute.xlu0 %422
    %v425 = vmul.f32 %v407, %v423
    %v426 = vsel %vm218, %v319, 0
    %428 = vmatprep.subr.mxu0 0.0
    %429 = vmatpush1.msra.mxu0 0.0
    %430 = vmatprep.subr.mxu0 0.0
    %431 = vmatpush1.msra.mxu0 0.0
    %432 = vmatprep.subr.mxu0 0.0
    %433 = vmatpush1.msra.mxu0 0.0
    %434 = vmatprep.subr.mxu0 0.0
    %435 = vmatpush1.msra.mxu0 0.0
    %436 = vmatprep.subr.mxu0 0.0
    %437 = vmatpush1.msra.mxu0 0.0
    %438 = vmatprep.subr.mxu0 0.0
    %439 = vmatpush1.msra.mxu0 0.0
    %440 = vmatprep.subr.mxu0 0.0
    %441 = vmatpush1.msra.mxu0 0.0
    %442 = vmatprep.subr.mxu0 0.0
    %443 = vmatpush1.msra.mxu0 0.0
    %444 = vmatprep.subr.mxu0 0.0
    %445 = vmatpush1.msra.mxu0 0.0
    %446 = vmatprep.subr.mxu0 0.0
    %447 = vmatpush1.msra.mxu0 0.0
    %448 = vmatprep.subr.mxu0 0.0
    %449 = vmatpush1.msra.mxu0 0.0
    %450 = vmatprep.subr.mxu0 0.0
    %451 = vmatpush1.msra.mxu0 0.0
    %452 = vmatprep.subr.mxu0 0.0
    %453 = vmatpush1.msra.mxu0 %v208
    %454 = vmatprep.subr.mxu0 0.0
    %455 = vmatpush1.msra.mxu0 %v207
    %456 = vmatprep.subr.mxu0 0.0
    %457 = vmatpush1.msra.mxu0 %v206
    %458 = vmatprep.subr.mxu0 0.0
    %459 = vmatpush1.msra.mxu0 %v205
    %460 = vmatprep.subr.mxu0 0.0
    %461 = vmatpush2.msra.mxu0 0.0
    %462 = vmatprep.subr.mxu0 0.0
    %463 = vmatpush2.msra.mxu0 0.0
    %464 = vmatprep.subr.mxu0 0.0
    %465 = vmatpush2.msra.mxu0 0.0
    %466 = vmatprep.subr.mxu0 0.0
    %467 = vmatpush2.msra.mxu0 0.0
    %468 = vmatprep.subr.mxu0 0.0
    %469 = vmatpush2.msra.mxu0 0.0
    %470 = vmatprep.subr.mxu0 0.0
    %471 = vmatpush2.msra.mxu0 0.0
    %472 = vmatprep.subr.mxu0 0.0
    %473 = vmatpush2.msra.mxu0 0.0
    %474 = vmatprep.subr.mxu0 0.0
    %475 = vmatpush2.msra.mxu0 0.0
    %476 = vmatprep.subr.mxu0 0.0
    %477 = vmatpush2.msra.mxu0 0.0
    %478 = vmatprep.subr.mxu0 0.0
    %479 = vmatpush2.msra.mxu0 0.0
    %480 = vmatprep.subr.mxu0 0.0
    %481 = vmatpush2.msra.mxu0 0.0
    %482 = vmatprep.subr.mxu0 0.0
    %483 = vmatpush2.msra.mxu0 0.0
    %484 = vmatprep.subr.mxu0 0.0
    %485 = vmatpush2.msra.mxu0 0.0
    %486 = vmatprep.subr.mxu0 0.0
    %487 = vmatpush2.msra.mxu0 0.0
    %488 = vmatprep.subr.mxu0 0.0
    %489 = vmatpush2.msra.mxu0 0.0
    %490 = vmatprep.subr.mxu0 0.0
    %491 = vmatpush2.msra.mxu0 0.0
    %492 = vmatprep.mubr.f32.mxu0 0.0
    %493 = vmatmul.mubr.f32.gmra.mxu0 %v426
    %v494 = vpop.f32.mrf.mxu0
    %v495 = vadd.f32 0.0, %v494
    %v496 = vpop.f32.mrf.mxu0
    %497 = vdwg.mxu0
    %v498 = vadd.f32 %v172, %v495
    %v499 = vxor.u32 %v498, 2147483648
    %v500 = vmul.f32 %v499, 1.442695
    %v501 = vpow.pop %v500
    %v502 = vadd.f32 %v501, 1.0
    %v503 = vrcp.pop %v502
    %v504 = vmul.f32 1.0, %v503
    %v505 = vtanh.pop %v498
    %v506 = vmul.f32 %v504, %v310
    %508 = vrot.lane.b32.xlu0 %v505, 64
    %v509 = vpop.permute.xlu0 %508
    %v511 = vmul.f32 %v504, %v509
    %513 = vrot.lane.b32.xlu0 %v511, 32
    %v514 = vpop.permute.xlu0 %513
    %v516 = vadd.f32 %v506, %v514
    %v517 = vtanh.pop %v516
    %519 = vrot.lane.b32.xlu0 %v517, 64
    %v520 = vpop.permute.xlu0 %519
    %v522 = vmul.f32 %v504, %v520
    %524 = vrot.lane.b32.xlu0 %v522, 32
    %v525 = vpop.permute.xlu0 %524
    %528 = vrot.lane.b32.xlu0 %v425, 64
    %v529 = vpop.permute.xlu0 %528
    %v531 = vsel %vm218, %v525, %v529
    %v533 = vsel %vm328, %v531, 0
    %535 = vmatprep.subr.mxu0 0.0
    %536 = vmatpush1.msra.mxu0 0.0
    %537 = vmatprep.subr.mxu0 0.0
    %538 = vmatpush1.msra.mxu0 0.0
    %539 = vmatprep.subr.mxu0 0.0
    %540 = vmatpush1.msra.mxu0 0.0
    %541 = vmatprep.subr.mxu0 0.0
    %542 = vmatpush1.msra.mxu0 0.0
    %543 = vmatprep.subr.mxu0 0.0
    %544 = vmatpush1.msra.mxu0 0.0
    %545 = vmatprep.subr.mxu0 0.0
    %546 = vmatpush1.msra.mxu0 0.0
    %547 = vmatprep.subr.mxu0 0.0
    %548 = vmatpush1.msra.mxu0 0.0
    %549 = vmatprep.subr.mxu0 0.0
    %550 = vmatpush1.msra.mxu0 0.0
    %551 = vmatprep.subr.mxu0 0.0
    %552 = vmatpush1.msra.mxu0 %v216
    %553 = vmatprep.subr.mxu0 0.0
    %554 = vmatpush1.msra.mxu0 %v215
    %555 = vmatprep.subr.mxu0 0.0
    %556 = vmatpush1.msra.mxu0 %v214
    %557 = vmatprep.subr.mxu0 0.0
    %558 = vmatpush1.msra.mxu0 %v213
    %559 = vmatprep.subr.mxu0 0.0
    %560 = vmatpush1.msra.mxu0 %v212
    %561 = vmatprep.subr.mxu0 0.0
    %562 = vmatpush1.msra.mxu0 %v211
    %563 = vmatprep.subr.mxu0 0.0
    %564 = vmatpush1.msra.mxu0 %v210
    %565 = vmatprep.subr.mxu0 0.0
    %566 = vmatpush1.msra.mxu0 %v209
    %567 = vmatprep.subr.mxu0 0.0
    %568 = vmatpush2.msra.mxu0 0.0
    %569 = vmatprep.subr.mxu0 0.0
    %570 = vmatpush2.msra.mxu0 0.0
    %571 = vmatprep.subr.mxu0 0.0
    %572 = vmatpush2.msra.mxu0 0.0
    %573 = vmatprep.subr.mxu0 0.0
    %574 = vmatpush2.msra.mxu0 0.0
    %575 = vmatprep.subr.mxu0 0.0
    %576 = vmatpush2.msra.mxu0 0.0
    %577 = vmatprep.subr.mxu0 0.0
    %578 = vmatpush2.msra.mxu0 0.0
    %579 = vmatprep.subr.mxu0 0.0
    %580 = vmatpush2.msra.mxu0 0.0
    %581 = vmatprep.subr.mxu0 0.0
    %582 = vmatpush2.msra.mxu0 0.0
    %583 = vmatprep.subr.mxu0 0.0
    %584 = vmatpush2.msra.mxu0 0.0
    %585 = vmatprep.subr.mxu0 0.0
    %586 = vmatpush2.msra.mxu0 0.0
    %587 = vmatprep.subr.mxu0 0.0
    %588 = vmatpush2.msra.mxu0 0.0
    %589 = vmatprep.subr.mxu0 0.0
    %590 = vmatpush2.msra.mxu0 0.0
    %591 = vmatprep.subr.mxu0 0.0
    %592 = vmatpush2.msra.mxu0 0.0
    %593 = vmatprep.subr.mxu0 0.0
    %594 = vmatpush2.msra.mxu0 0.0
    %595 = vmatprep.subr.mxu0 0.0
    %596 = vmatpush2.msra.mxu0 0.0
    %597 = vmatprep.subr.mxu0 0.0
    %598 = vmatpush2.msra.mxu0 0.0
    %599 = vmatprep.mubr.f32.mxu0 0.0
    %600 = vmatmul.mubr.f32.gmra.mxu0 %v533
    %v601 = vpop.f32.mrf.mxu0
    %v602 = vadd.f32 %v326, %v601
    %v603 = vpop.f32.mrf.mxu0
    %604 = vdwg.mxu0
    %v605 = vxor.u32 %v602, 2147483648
    %v606 = vmul.f32 %v605, 1.442695
    %v607 = vpow.pop %v606
    %v608 = vadd.f32 %v607, 1.0
    %v609 = vrcp.pop %v608
    %v610 = vmul.f32 1.0, %v609
    %v611 = vtanh.pop %v602
    %v612 = vmul.f32 %v610, %v419
    %614 = vrot.lane.b32.xlu0 %v611, 64
    %v615 = vpop.permute.xlu0 %614
    %v617 = vmul.f32 %v610, %v615
    %619 = vrot.lane.b32.xlu0 %v617, 32
    %v620 = vpop.permute.xlu0 %619
    %v622 = vadd.f32 %v612, %v620
    %v623 = vtanh.pop %v622
    %625 = vrot.lane.b32.xlu0 %v623, 64
    %v626 = vpop.permute.xlu0 %625
    %v628 = vmul.f32 %v610, %v626
    %v629 = vsel %vm218, %v525, 0
    %631 = vmatprep.subr.mxu0 0.0
    %632 = vmatpush1.msra.mxu0 0.0
    %633 = vmatprep.subr.mxu0 0.0
    %634 = vmatpush1.msra.mxu0 0.0
    %635 = vmatprep.subr.mxu0 0.0
    %636 = vmatpush1.msra.mxu0 0.0
    %637 = vmatprep.subr.mxu0 0.0
    %638 = vmatpush1.msra.mxu0 0.0
    %639 = vmatprep.subr.mxu0 0.0
    %640 = vmatpush1.msra.mxu0 0.0
    %641 = vmatprep.subr.mxu0 0.0
    %642 = vmatpush1.msra.mxu0 0.0
    %643 = vmatprep.subr.mxu0 0.0
    %644 = vmatpush1.msra.mxu0 0.0
    %645 = vmatprep.subr.mxu0 0.0
    %646 = vmatpush1.msra.mxu0 0.0
    %647 = vmatprep.subr.mxu0 0.0
    %648 = vmatpush1.msra.mxu0 0.0
    %649 = vmatprep.subr.mxu0 0.0
    %650 = vmatpush1.msra.mxu0 0.0
    %651 = vmatprep.subr.mxu0 0.0
    %652 = vmatpush1.msra.mxu0 0.0
    %653 = vmatprep.subr.mxu0 0.0
    %654 = vmatpush1.msra.mxu0 0.0
    %655 = vmatprep.subr.mxu0 0.0
    %656 = vmatpush1.msra.mxu0 %v208
    %657 = vmatprep.subr.mxu0 0.0
    %658 = vmatpush1.msra.mxu0 %v207
    %659 = vmatprep.subr.mxu0 0.0
    %660 = vmatpush1.msra.mxu0 %v206
    %661 = vmatprep.subr.mxu0 0.0
    %662 = vmatpush1.msra.mxu0 %v205
    %663 = vmatprep.subr.mxu0 0.0
    %664 = vmatpush2.msra.mxu0 0.0
    %665 = vmatprep.subr.mxu0 0.0
    %666 = vmatpush2.msra.mxu0 0.0
    %667 = vmatprep.subr.mxu0 0.0
    %668 = vmatpush2.msra.mxu0 0.0
    %669 = vmatprep.subr.mxu0 0.0
    %670 = vmatpush2.msra.mxu0 0.0
    %671 = vmatprep.subr.mxu0 0.0
    %672 = vmatpush2.msra.mxu0 0.0
    %673 = vmatprep.subr.mxu0 0.0
    %674 = vmatpush2.msra.mxu0 0.0
    %675 = vmatprep.subr.mxu0 0.0
    %676 = vmatpush2.msra.mxu0 0.0
    %677 = vmatprep.subr.mxu0 0.0
    %678 = vmatpush2.msra.mxu0 0.0
    %679 = vmatprep.subr.mxu0 0.0
    %680 = vmatpush2.msra.mxu0 0.0
    %681 = vmatprep.subr.mxu0 0.0
    %682 = vmatpush2.msra.mxu0 0.0
    %683 = vmatprep.subr.mxu0 0.0
    %684 = vmatpush2.msra.mxu0 0.0
    %685 = vmatprep.subr.mxu0 0.0
    %686 = vmatpush2.msra.mxu0 0.0
    %687 = vmatprep.subr.mxu0 0.0
    %688 = vmatpush2.msra.mxu0 0.0
    %689 = vmatprep.subr.mxu0 0.0
    %690 = vmatpush2.msra.mxu0 0.0
    %691 = vmatprep.subr.mxu0 0.0
    %692 = vmatpush2.msra.mxu0 0.0
    %693 = vmatprep.subr.mxu0 0.0
    %694 = vmatpush2.msra.mxu0 0.0
    %695 = vmatprep.mubr.f32.mxu0 0.0
    %696 = vmatmul.mubr.f32.gmra.mxu0 %v629
    %v697 = vpop.f32.mrf.mxu0
    %v698 = vadd.f32 0.0, %v697
    %v699 = vpop.f32.mrf.mxu0
    %700 = vdwg.mxu0
    %v701 = vadd.f32 %v177, %v698
    %v702 = vxor.u32 %v701, 2147483648
    %v703 = vmul.f32 %v702, 1.442695
    %v704 = vpow.pop %v703
    %v705 = vadd.f32 %v704, 1.0
    %v706 = vrcp.pop %v705
    %v707 = vmul.f32 1.0, %v706
    %v708 = vtanh.pop %v701
    %v709 = vmul.f32 %v707, %v516
    %711 = vrot.lane.b32.xlu0 %v708, 64
    %v712 = vpop.permute.xlu0 %711
    %v714 = vmul.f32 %v707, %v712
    %716 = vrot.lane.b32.xlu0 %v714, 32
    %v717 = vpop.permute.xlu0 %716
    %v719 = vadd.f32 %v709, %v717
    %v720 = vtanh.pop %v719
    %722 = vrot.lane.b32.xlu0 %v720, 64
    %v723 = vpop.permute.xlu0 %722
    %v725 = vmul.f32 %v707, %v723
    %727 = vrot.lane.b32.xlu0 %v725, 32
    %v728 = vpop.permute.xlu0 %727
    %731 = vrot.lane.b32.xlu0 %v628, 64
    %v732 = vpop.permute.xlu0 %731
    %v734 = vsel %vm218, %v728, %v732
    %v736 = vsel %vm328, %v734, 0
    %738 = vmatprep.subr.mxu0 0.0
    %739 = vmatpush1.msra.mxu0 0.0
    %740 = vmatprep.subr.mxu0 0.0
    %741 = vmatpush1.msra.mxu0 0.0
    %742 = vmatprep.subr.mxu0 0.0
    %743 = vmatpush1.msra.mxu0 0.0
    %744 = vmatprep.subr.mxu0 0.0
    %745 = vmatpush1.msra.mxu0 0.0
    %746 = vmatprep.subr.mxu0 0.0
    %747 = vmatpush1.msra.mxu0 0.0
    %748 = vmatprep.subr.mxu0 0.0
    %749 = vmatpush1.msra.mxu0 0.0
    %750 = vmatprep.subr.mxu0 0.0
    %751 = vmatpush1.msra.mxu0 0.0
    %752 = vmatprep.subr.mxu0 0.0
    %753 = vmatpush1.msra.mxu0 0.0
    %754 = vmatprep.subr.mxu0 0.0
    %755 = vmatpush1.msra.mxu0 %v216
    %756 = vmatprep.subr.mxu0 0.0
    %757 = vmatpush1.msra.mxu0 %v215
    %758 = vmatprep.subr.mxu0 0.0
    %759 = vmatpush1.msra.mxu0 %v214
    %760 = vmatprep.subr.mxu0 0.0
    %761 = vmatpush1.msra.mxu0 %v213
    %762 = vmatprep.subr.mxu0 0.0
    %763 = vmatpush1.msra.mxu0 %v212
    %764 = vmatprep.subr.mxu0 0.0
    %765 = vmatpush1.msra.mxu0 %v211
    %766 = vmatprep.subr.mxu0 0.0
    %767 = vmatpush1.msra.mxu0 %v210
    %768 = vmatprep.subr.mxu0 0.0
    %769 = vmatpush1.msra.mxu0 %v209
    %770 = vmatprep.subr.mxu0 0.0
    %771 = vmatpush2.msra.mxu0 0.0
    %772 = vmatprep.subr.mxu0 0.0
    %773 = vmatpush2.msra.mxu0 0.0
    %774 = vmatprep.subr.mxu0 0.0
    %775 = vmatpush2.msra.mxu0 0.0
    %776 = vmatprep.subr.mxu0 0.0
    %777 = vmatpush2.msra.mxu0 0.0
    %778 = vmatprep.subr.mxu0 0.0
    %779 = vmatpush2.msra.mxu0 0.0
    %780 = vmatprep.subr.mxu0 0.0
    %781 = vmatpush2.msra.mxu0 0.0
    %782 = vmatprep.subr.mxu0 0.0
    %783 = vmatpush2.msra.mxu0 0.0
    %784 = vmatprep.subr.mxu0 0.0
    %785 = vmatpush2.msra.mxu0 0.0
    %786 = vmatprep.subr.mxu0 0.0
    %787 = vmatpush2.msra.mxu0 0.0
    %788 = vmatprep.subr.mxu0 0.0
    %789 = vmatpush2.msra.mxu0 0.0
    %790 = vmatprep.subr.mxu0 0.0
    %791 = vmatpush2.msra.mxu0 0.0
    %792 = vmatprep.subr.mxu0 0.0
    %793 = vmatpush2.msra.mxu0 0.0
    %794 = vmatprep.subr.mxu0 0.0
    %795 = vmatpush2.msra.mxu0 0.0
    %796 = vmatprep.subr.mxu0 0.0
    %797 = vmatpush2.msra.mxu0 0.0
    %798 = vmatprep.subr.mxu0 0.0
    %799 = vmatpush2.msra.mxu0 0.0
    %800 = vmatprep.subr.mxu0 0.0
    %801 = vmatpush2.msra.mxu0 0.0
    %802 = vmatprep.mubr.f32.mxu0 0.0
    %803 = vmatmul.mubr.f32.gmra.mxu0 %v736
    %v804 = vpop.f32.mrf.mxu0
    %v805 = vadd.f32 %v326, %v804
    %v806 = vpop.f32.mrf.mxu0
    %807 = vdwg.mxu0
    %v808 = vxor.u32 %v805, 2147483648
    %v809 = vmul.f32 %v808, 1.442695
    %v810 = vpow.pop %v809
    %v811 = vadd.f32 %v810, 1.0
    %v812 = vrcp.pop %v811
    %v813 = vmul.f32 1.0, %v812
    %v814 = vtanh.pop %v805
    %v815 = vmul.f32 %v813, %v622
    %817 = vrot.lane.b32.xlu0 %v814, 64
    %v818 = vpop.permute.xlu0 %817
    %v820 = vmul.f32 %v813, %v818
    %822 = vrot.lane.b32.xlu0 %v820, 32
    %v823 = vpop.permute.xlu0 %822
    %v825 = vadd.f32 %v815, %v823
    %v826 = vtanh.pop %v825
    %828 = vrot.lane.b32.xlu0 %v826, 64
    %v829 = vpop.permute.xlu0 %828
    %v831 = vmul.f32 %v813, %v829
    %v832 = vsel %vm218, %v728, 0
    %834 = vmatprep.subr.mxu0 0.0
    %835 = vmatpush1.msra.mxu0 0.0
    %836 = vmatprep.subr.mxu0 0.0
    %837 = vmatpush1.msra.mxu0 0.0
    %838 = vmatprep.subr.mxu0 0.0
    %839 = vmatpush1.msra.mxu0 0.0
    %840 = vmatprep.subr.mxu0 0.0
    %841 = vmatpush1.msra.mxu0 0.0
    %842 = vmatprep.subr.mxu0 0.0
    %843 = vmatpush1.msra.mxu0 0.0
    %844 = vmatprep.subr.mxu0 0.0
    %845 = vmatpush1.msra.mxu0 0.0
    %846 = vmatprep.subr.mxu0 0.0
    %847 = vmatpush1.msra.mxu0 0.0
    %848 = vmatprep.subr.mxu0 0.0
    %849 = vmatpush1.msra.mxu0 0.0
    %850 = vmatprep.subr.mxu0 0.0
    %851 = vmatpush1.msra.mxu0 0.0
    %852 = vmatprep.subr.mxu0 0.0
    %853 = vmatpush1.msra.mxu0 0.0
    %854 = vmatprep.subr.mxu0 0.0
    %855 = vmatpush1.msra.mxu0 0.0
    %856 = vmatprep.subr.mxu0 0.0
    %857 = vmatpush1.msra.mxu0 0.0
    %858 = vmatprep.subr.mxu0 0.0
    %859 = vmatpush1.msra.mxu0 %v208
    %860 = vmatprep.subr.mxu0 0.0
    %861 = vmatpush1.msra.mxu0 %v207
    %862 = vmatprep.subr.mxu0 0.0
    %863 = vmatpush1.msra.mxu0 %v206
    %864 = vmatprep.subr.mxu0 0.0
    %865 = vmatpush1.msra.mxu0 %v205
    %866 = vmatprep.subr.mxu0 0.0
    %867 = vmatpush2.msra.mxu0 0.0
    %868 = vmatprep.subr.mxu0 0.0
    %869 = vmatpush2.msra.mxu0 0.0
    %870 = vmatprep.subr.mxu0 0.0
    %871 = vmatpush2.msra.mxu0 0.0
    %872 = vmatprep.subr.mxu0 0.0
    %873 = vmatpush2.msra.mxu0 0.0
    %874 = vmatprep.subr.mxu0 0.0
    %875 = vmatpush2.msra.mxu0 0.0
    %876 = vmatprep.subr.mxu0 0.0
    %877 = vmatpush2.msra.mxu0 0.0
    %878 = vmatprep.subr.mxu0 0.0
    %879 = vmatpush2.msra.mxu0 0.0
    %880 = vmatprep.subr.mxu0 0.0
    %881 = vmatpush2.msra.mxu0 0.0
    %882 = vmatprep.subr.mxu0 0.0
    %883 = vmatpush2.msra.mxu0 0.0
    %884 = vmatprep.subr.mxu0 0.0
    %885 = vmatpush2.msra.mxu0 0.0
    %886 = vmatprep.subr.mxu0 0.0
    %887 = vmatpush2.msra.mxu0 0.0
    %888 = vmatprep.subr.mxu0 0.0
    %889 = vmatpush2.msra.mxu0 0.0
    %890 = vmatprep.subr.mxu0 0.0
    %891 = vmatpush2.msra.mxu0 0.0
    %892 = vmatprep.subr.mxu0 0.0
    %893 = vmatpush2.msra.mxu0 0.0
    %894 = vmatprep.subr.mxu0 0.0
    %895 = vmatpush2.msra.mxu0 0.0
    %896 = vmatprep.subr.mxu0 0.0
    %897 = vmatpush2.msra.mxu0 0.0
    %898 = vmatprep.mubr.f32.mxu0 0.0
    %899 = vmatmul.mubr.f32.gmra.mxu0 %v832
    %v900 = vpop.f32.mrf.mxu0
    %v901 = vadd.f32 0.0, %v900
    %v902 = vpop.f32.mrf.mxu0
    %903 = vdwg.mxu0
    %v904 = vadd.f32 %v182, %v901
    %v905 = vxor.u32 %v904, 2147483648
    %v906 = vmul.f32 %v905, 1.442695
    %v907 = vpow.pop %v906
    %v908 = vadd.f32 %v907, 1.0
    %v909 = vrcp.pop %v908
    %v910 = vmul.f32 1.0, %v909
    %v911 = vtanh.pop %v904
    %v912 = vmul.f32 %v910, %v719
    %914 = vrot.lane.b32.xlu0 %v911, 64
    %v915 = vpop.permute.xlu0 %914
    %v917 = vmul.f32 %v910, %v915
    %919 = vrot.lane.b32.xlu0 %v917, 32
    %v920 = vpop.permute.xlu0 %919
    %v922 = vadd.f32 %v912, %v920
    %v923 = vtanh.pop %v922
    %925 = vrot.lane.b32.xlu0 %v923, 64
    %v926 = vpop.permute.xlu0 %925
    %v928 = vmul.f32 %v910, %v926
    %930 = vrot.lane.b32.xlu0 %v928, 32
    %v931 = vpop.permute.xlu0 %930
    %934 = vrot.lane.b32.xlu0 %v831, 64
    %v935 = vpop.permute.xlu0 %934
    %v937 = vsel %vm218, %v931, %v935
    %v939 = vsel %vm328, %v937, 0
    %941 = vmatprep.subr.mxu0 0.0
    %942 = vmatpush1.msra.mxu0 0.0
    %943 = vmatprep.subr.mxu0 0.0
    %944 = vmatpush1.msra.mxu0 0.0
    %945 = vmatprep.subr.mxu0 0.0
    %946 = vmatpush1.msra.mxu0 0.0
    %947 = vmatprep.subr.mxu0 0.0
    %948 = vmatpush1.msra.mxu0 0.0
    %949 = vmatprep.subr.mxu0 0.0
    %950 = vmatpush1.msra.mxu0 0.0
    %951 = vmatprep.subr.mxu0 0.0
    %952 = vmatpush1.msra.mxu0 0.0
    %953 = vmatprep.subr.mxu0 0.0
    %954 = vmatpush1.msra.mxu0 0.0
    %955 = vmatprep.subr.mxu0 0.0
    %956 = vmatpush1.msra.mxu0 0.0
    %957 = vmatprep.subr.mxu0 0.0
    %958 = vmatpush1.msra.mxu0 %v216
    %959 = vmatprep.subr.mxu0 0.0
    %960 = vmatpush1.msra.mxu0 %v215
    %961 = vmatprep.subr.mxu0 0.0
    %962 = vmatpush1.msra.mxu0 %v214
    %963 = vmatprep.subr.mxu0 0.0
    %964 = vmatpush1.msra.mxu0 %v213
    %965 = vmatprep.subr.mxu0 0.0
    %966 = vmatpush1.msra.mxu0 %v212
    %967 = vmatprep.subr.mxu0 0.0
    %968 = vmatpush1.msra.mxu0 %v211
    %969 = vmatprep.subr.mxu0 0.0
    %970 = vmatpush1.msra.mxu0 %v210
    %971 = vmatprep.subr.mxu0 0.0
    %972 = vmatpush1.msra.mxu0 %v209
    %973 = vmatprep.subr.mxu0 0.0
    %974 = vmatpush2.msra.mxu0 0.0
    %975 = vmatprep.subr.mxu0 0.0
    %976 = vmatpush2.msra.mxu0 0.0
    %977 = vmatprep.subr.mxu0 0.0
    %978 = vmatpush2.msra.mxu0 0.0
    %979 = vmatprep.subr.mxu0 0.0
    %980 = vmatpush2.msra.mxu0 0.0
    %981 = vmatprep.subr.mxu0 0.0
    %982 = vmatpush2.msra.mxu0 0.0
    %983 = vmatprep.subr.mxu0 0.0
    %984 = vmatpush2.msra.mxu0 0.0
    %985 = vmatprep.subr.mxu0 0.0
    %986 = vmatpush2.msra.mxu0 0.0
    %987 = vmatprep.subr.mxu0 0.0
    %988 = vmatpush2.msra.mxu0 0.0
    %989 = vmatprep.subr.mxu0 0.0
    %990 = vmatpush2.msra.mxu0 0.0
    %991 = vmatprep.subr.mxu0 0.0
    %992 = vmatpush2.msra.mxu0 0.0
    %993 = vmatprep.subr.mxu0 0.0
    %994 = vmatpush2.msra.mxu0 0.0
    %995 = vmatprep.subr.mxu0 0.0
    %996 = vmatpush2.msra.mxu0 0.0
    %997 = vmatprep.subr.mxu0 0.0
    %998 = vmatpush2.msra.mxu0 0.0
    %999 = vmatprep.subr.mxu0 0.0
    %1000 = vmatpush2.msra.mxu0 0.0
    %1001 = vmatprep.subr.mxu0 0.0
    %1002 = vmatpush2.msra.mxu0 0.0
    %1003 = vmatprep.subr.mxu0 0.0
    %1004 = vmatpush2.msra.mxu0 0.0
    %1005 = vmatprep.mubr.f32.mxu0 0.0
    %1006 = vmatmul.mubr.f32.gmra.mxu0 %v939
    %v1007 = vpop.f32.mrf.mxu0
    %v1008 = vadd.f32 %v326, %v1007
    %v1009 = vpop.f32.mrf.mxu0
    %1010 = vdwg.mxu0
    %v1011 = vxor.u32 %v1008, 2147483648
    %v1012 = vmul.f32 %v1011, 1.442695
    %v1013 = vpow.pop %v1012
    %v1014 = vadd.f32 %v1013, 1.0
    %v1015 = vrcp.pop %v1014
    %v1016 = vmul.f32 1.0, %v1015
    %v1017 = vtanh.pop %v1008
    %v1018 = vmul.f32 %v1016, %v825
    %1020 = vrot.lane.b32.xlu0 %v1017, 64
    %v1021 = vpop.permute.xlu0 %1020
    %v1023 = vmul.f32 %v1016, %v1021
    %1025 = vrot.lane.b32.xlu0 %v1023, 32
    %v1026 = vpop.permute.xlu0 %1025
    %v1028 = vadd.f32 %v1018, %v1026
    %v1029 = vtanh.pop %v1028
    %1031 = vrot.lane.b32.xlu0 %v1029, 64
    %v1032 = vpop.permute.xlu0 %1031
    %v1034 = vmul.f32 %v1016, %v1032
    %v1035 = vsel %vm218, %v931, 0
    %1037 = vmatprep.subr.mxu0 0.0
    %1038 = vmatpush1.msra.mxu0 0.0
    %1039 = vmatprep.subr.mxu0 0.0
    %1040 = vmatpush1.msra.mxu0 0.0
    %1041 = vmatprep.subr.mxu0 0.0
    %1042 = vmatpush1.msra.mxu0 0.0
    %1043 = vmatprep.subr.mxu0 0.0
    %1044 = vmatpush1.msra.mxu0 0.0
    %1045 = vmatprep.subr.mxu0 0.0
    %1046 = vmatpush1.msra.mxu0 0.0
    %1047 = vmatprep.subr.mxu0 0.0
    %1048 = vmatpush1.msra.mxu0 0.0
    %1049 = vmatprep.subr.mxu0 0.0
    %1050 = vmatpush1.msra.mxu0 0.0
    %1051 = vmatprep.subr.mxu0 0.0
    %1052 = vmatpush1.msra.mxu0 0.0
    %1053 = vmatprep.subr.mxu0 0.0
    %1054 = vmatpush1.msra.mxu0 0.0
    %1055 = vmatprep.subr.mxu0 0.0
    %1056 = vmatpush1.msra.mxu0 0.0
    %1057 = vmatprep.subr.mxu0 0.0
    %1058 = vmatpush1.msra.mxu0 0.0
    %1059 = vmatprep.subr.mxu0 0.0
    %1060 = vmatpush1.msra.mxu0 0.0
    %1061 = vmatprep.subr.mxu0 0.0
    %1062 = vmatpush1.msra.mxu0 %v208
    %1063 = vmatprep.subr.mxu0 0.0
    %1064 = vmatpush1.msra.mxu0 %v207
    %1065 = vmatprep.subr.mxu0 0.0
    %1066 = vmatpush1.msra.mxu0 %v206
    %1067 = vmatprep.subr.mxu0 0.0
    %1068 = vmatpush1.msra.mxu0 %v205
    %1069 = vmatprep.subr.mxu0 0.0
    %1070 = vmatpush2.msra.mxu0 0.0
    %1071 = vmatprep.subr.mxu0 0.0
    %1072 = vmatpush2.msra.mxu0 0.0
    %1073 = vmatprep.subr.mxu0 0.0
    %1074 = vmatpush2.msra.mxu0 0.0
    %1075 = vmatprep.subr.mxu0 0.0
    %1076 = vmatpush2.msra.mxu0 0.0
    %1077 = vmatprep.subr.mxu0 0.0
    %1078 = vmatpush2.msra.mxu0 0.0
    %1079 = vmatprep.subr.mxu0 0.0
    %1080 = vmatpush2.msra.mxu0 0.0
    %1081 = vmatprep.subr.mxu0 0.0
    %1082 = vmatpush2.msra.mxu0 0.0
    %1083 = vmatprep.subr.mxu0 0.0
    %1084 = vmatpush2.msra.mxu0 0.0
    %1085 = vmatprep.subr.mxu0 0.0
    %1086 = vmatpush2.msra.mxu0 0.0
    %1087 = vmatprep.subr.mxu0 0.0
    %1088 = vmatpush2.msra.mxu0 0.0
    %1089 = vmatprep.subr.mxu0 0.0
    %1090 = vmatpush2.msra.mxu0 0.0
    %1091 = vmatprep.subr.mxu0 0.0
    %1092 = vmatpush2.msra.mxu0 0.0
    %1093 = vmatprep.subr.mxu0 0.0
    %1094 = vmatpush2.msra.mxu0 0.0
    %1095 = vmatprep.subr.mxu0 0.0
    %1096 = vmatpush2.msra.mxu0 0.0
    %1097 = vmatprep.subr.mxu0 0.0
    %1098 = vmatpush2.msra.mxu0 0.0
    %1099 = vmatprep.subr.mxu0 0.0
    %1100 = vmatpush2.msra.mxu0 0.0
    %1101 = vmatprep.mubr.f32.mxu0 0.0
    %1102 = vmatmul.mubr.f32.gmra.mxu0 %v1035
    %v1103 = vpop.f32.mrf.mxu0
    %v1104 = vadd.f32 0.0, %v1103
    %v1105 = vpop.f32.mrf.mxu0
    %1106 = vdwg.mxu0
    %v1107 = vadd.f32 %v187, %v1104
    %v1108 = vxor.u32 %v1107, 2147483648
    %v1109 = vmul.f32 %v1108, 1.442695
    %v1110 = vpow.pop %v1109
    %v1111 = vadd.f32 %v1110, 1.0
    %v1112 = vrcp.pop %v1111
    %v1113 = vmul.f32 1.0, %v1112
    %v1114 = vtanh.pop %v1107
    %v1115 = vmul.f32 %v1113, %v922
    %1117 = vrot.lane.b32.xlu0 %v1114, 64
    %v1118 = vpop.permute.xlu0 %1117
    %v1120 = vmul.f32 %v1113, %v1118
    %1122 = vrot.lane.b32.xlu0 %v1120, 32
    %v1123 = vpop.permute.xlu0 %1122
    %v1125 = vadd.f32 %v1115, %v1123
    %v1126 = vtanh.pop %v1125
    %1128 = vrot.lane.b32.xlu0 %v1126, 64
    %v1129 = vpop.permute.xlu0 %1128
    %v1131 = vmul.f32 %v1113, %v1129
    %1133 = vrot.lane.b32.xlu0 %v1131, 32
    %v1134 = vpop.permute.xlu0 %1133
    %1137 = vrot.lane.b32.xlu0 %v1034, 64
    %v1138 = vpop.permute.xlu0 %1137
    %v1140 = vsel %vm218, %v1134, %v1138
    %v1142 = vsel %vm328, %v1140, 0
    %1144 = vmatprep.subr.mxu0 0.0
    %1145 = vmatpush1.msra.mxu0 0.0
    %1146 = vmatprep.subr.mxu0 0.0
    %1147 = vmatpush1.msra.mxu0 0.0
    %1148 = vmatprep.subr.mxu0 0.0
    %1149 = vmatpush1.msra.mxu0 0.0
    %1150 = vmatprep.subr.mxu0 0.0
    %1151 = vmatpush1.msra.mxu0 0.0
    %1152 = vmatprep.subr.mxu0 0.0
    %1153 = vmatpush1.msra.mxu0 0.0
    %1154 = vmatprep.subr.mxu0 0.0
    %1155 = vmatpush1.msra.mxu0 0.0
    %1156 = vmatprep.subr.mxu0 0.0
    %1157 = vmatpush1.msra.mxu0 0.0
    %1158 = vmatprep.subr.mxu0 0.0
    %1159 = vmatpush1.msra.mxu0 0.0
    %1160 = vmatprep.subr.mxu0 0.0
    %1161 = vmatpush1.msra.mxu0 %v216
    %1162 = vmatprep.subr.mxu0 0.0
    %1163 = vmatpush1.msra.mxu0 %v215
    %1164 = vmatprep.subr.mxu0 0.0
    %1165 = vmatpush1.msra.mxu0 %v214
    %1166 = vmatprep.subr.mxu0 0.0
    %1167 = vmatpush1.msra.mxu0 %v213
    %1168 = vmatprep.subr.mxu0 0.0
    %1169 = vmatpush1.msra.mxu0 %v212
    %1170 = vmatprep.subr.mxu0 0.0
    %1171 = vmatpush1.msra.mxu0 %v211
    %1172 = vmatprep.subr.mxu0 0.0
    %1173 = vmatpush1.msra.mxu0 %v210
    %1174 = vmatprep.subr.mxu0 0.0
    %1175 = vmatpush1.msra.mxu0 %v209
    %1176 = vmatprep.subr.mxu0 0.0
    %1177 = vmatpush2.msra.mxu0 0.0
    %1178 = vmatprep.subr.mxu0 0.0
    %1179 = vmatpush2.msra.mxu0 0.0
    %1180 = vmatprep.subr.mxu0 0.0
    %1181 = vmatpush2.msra.mxu0 0.0
    %1182 = vmatprep.subr.mxu0 0.0
    %1183 = vmatpush2.msra.mxu0 0.0
    %1184 = vmatprep.subr.mxu0 0.0
    %1185 = vmatpush2.msra.mxu0 0.0
    %1186 = vmatprep.subr.mxu0 0.0
    %1187 = vmatpush2.msra.mxu0 0.0
    %1188 = vmatprep.subr.mxu0 0.0
    %1189 = vmatpush2.msra.mxu0 0.0
    %1190 = vmatprep.subr.mxu0 0.0
    %1191 = vmatpush2.msra.mxu0 0.0
    %1192 = vmatprep.subr.mxu0 0.0
    %1193 = vmatpush2.msra.mxu0 0.0
    %1194 = vmatprep.subr.mxu0 0.0
    %1195 = vmatpush2.msra.mxu0 0.0
    %1196 = vmatprep.subr.mxu0 0.0
    %1197 = vmatpush2.msra.mxu0 0.0
    %1198 = vmatprep.subr.mxu0 0.0
    %1199 = vmatpush2.msra.mxu0 0.0
    %1200 = vmatprep.subr.mxu0 0.0
    %1201 = vmatpush2.msra.mxu0 0.0
    %1202 = vmatprep.subr.mxu0 0.0
    %1203 = vmatpush2.msra.mxu0 0.0
    %1204 = vmatprep.subr.mxu0 0.0
    %1205 = vmatpush2.msra.mxu0 0.0
    %1206 = vmatprep.subr.mxu0 0.0
    %1207 = vmatpush2.msra.mxu0 0.0
    %1208 = vmatprep.mubr.f32.mxu0 0.0
    %1209 = vmatmul.mubr.f32.gmra.mxu0 %v1142
    %v1210 = vpop.f32.mrf.mxu0
    %v1211 = vadd.f32 %v326, %v1210
    %v1212 = vpop.f32.mrf.mxu0
    %1213 = vdwg.mxu0
    %v1214 = vxor.u32 %v1211, 2147483648
    %v1215 = vmul.f32 %v1214, 1.442695
    %v1216 = vpow.pop %v1215
    %v1217 = vadd.f32 %v1216, 1.0
    %v1218 = vrcp.pop %v1217
    %v1219 = vmul.f32 1.0, %v1218
    %v1220 = vtanh.pop %v1211
    %v1221 = vmul.f32 %v1219, %v1028
    %1223 = vrot.lane.b32.xlu0 %v1220, 64
    %v1224 = vpop.permute.xlu0 %1223
    %v1226 = vmul.f32 %v1219, %v1224
    %1228 = vrot.lane.b32.xlu0 %v1226, 32
    %v1229 = vpop.permute.xlu0 %1228
    %v1231 = vadd.f32 %v1221, %v1229
    %v1232 = vtanh.pop %v1231
    %1234 = vrot.lane.b32.xlu0 %v1232, 64
    %v1235 = vpop.permute.xlu0 %1234
    %v1237 = vmul.f32 %v1219, %v1235
    %v1238 = vsel %vm218, %v1134, 0
    %1240 = vmatprep.subr.mxu0 0.0
    %1241 = vmatpush1.msra.mxu0 0.0
    %1242 = vmatprep.subr.mxu0 0.0
    %1243 = vmatpush1.msra.mxu0 0.0
    %1244 = vmatprep.subr.mxu0 0.0
    %1245 = vmatpush1.msra.mxu0 0.0
    %1246 = vmatprep.subr.mxu0 0.0
    %1247 = vmatpush1.msra.mxu0 0.0
    %1248 = vmatprep.subr.mxu0 0.0
    %1249 = vmatpush1.msra.mxu0 0.0
    %1250 = vmatprep.subr.mxu0 0.0
    %1251 = vmatpush1.msra.mxu0 0.0
    %1252 = vmatprep.subr.mxu0 0.0
    %1253 = vmatpush1.msra.mxu0 0.0
    %1254 = vmatprep.subr.mxu0 0.0
    %1255 = vmatpush1.msra.mxu0 0.0
    %1256 = vmatprep.subr.mxu0 0.0
    %1257 = vmatpush1.msra.mxu0 0.0
    %1258 = vmatprep.subr.mxu0 0.0
    %1259 = vmatpush1.msra.mxu0 0.0
    %1260 = vmatprep.subr.mxu0 0.0
    %1261 = vmatpush1.msra.mxu0 0.0
    %1262 = vmatprep.subr.mxu0 0.0
    %1263 = vmatpush1.msra.mxu0 0.0
    %1264 = vmatprep.subr.mxu0 0.0
    %1265 = vmatpush1.msra.mxu0 %v208
    %1266 = vmatprep.subr.mxu0 0.0
    %1267 = vmatpush1.msra.mxu0 %v207
    %1268 = vmatprep.subr.mxu0 0.0
    %1269 = vmatpush1.msra.mxu0 %v206
    %1270 = vmatprep.subr.mxu0 0.0
    %1271 = vmatpush1.msra.mxu0 %v205
    %1272 = vmatprep.subr.mxu0 0.0
    %1273 = vmatpush2.msra.mxu0 0.0
    %1274 = vmatprep.subr.mxu0 0.0
    %1275 = vmatpush2.msra.mxu0 0.0
    %1276 = vmatprep.subr.mxu0 0.0
    %1277 = vmatpush2.msra.mxu0 0.0
    %1278 = vmatprep.subr.mxu0 0.0
    %1279 = vmatpush2.msra.mxu0 0.0
    %1280 = vmatprep.subr.mxu0 0.0
    %1281 = vmatpush2.msra.mxu0 0.0
    %1282 = vmatprep.subr.mxu0 0.0
    %1283 = vmatpush2.msra.mxu0 0.0
    %1284 = vmatprep.subr.mxu0 0.0
    %1285 = vmatpush2.msra.mxu0 0.0
    %1286 = vmatprep.subr.mxu0 0.0
    %1287 = vmatpush2.msra.mxu0 0.0
    %1288 = vmatprep.subr.mxu0 0.0
    %1289 = vmatpush2.msra.mxu0 0.0
    %1290 = vmatprep.subr.mxu0 0.0
    %1291 = vmatpush2.msra.mxu0 0.0
    %1292 = vmatprep.subr.mxu0 0.0
    %1293 = vmatpush2.msra.mxu0 0.0
    %1294 = vmatprep.subr.mxu0 0.0
    %1295 = vmatpush2.msra.mxu0 0.0
    %1296 = vmatprep.subr.mxu0 0.0
    %1297 = vmatpush2.msra.mxu0 0.0
    %1298 = vmatprep.subr.mxu0 0.0
    %1299 = vmatpush2.msra.mxu0 0.0
    %1300 = vmatprep.subr.mxu0 0.0
    %1301 = vmatpush2.msra.mxu0 0.0
    %1302 = vmatprep.subr.mxu0 0.0
    %1303 = vmatpush2.msra.mxu0 0.0
    %1304 = vmatprep.mubr.f32.mxu0 0.0
    %1305 = vmatmul.mubr.f32.gmra.mxu0 %v1238
    %v1306 = vpop.f32.mrf.mxu0
    %v1307 = vadd.f32 0.0, %v1306
    %v1308 = vpop.f32.mrf.mxu0
    %1309 = vdwg.mxu0
    %v1310 = vadd.f32 %v192, %v1307
    %v1311 = vxor.u32 %v1310, 2147483648
    %v1312 = vmul.f32 %v1311, 1.442695
    %v1313 = vpow.pop %v1312
    %v1314 = vadd.f32 %v1313, 1.0
    %v1315 = vrcp.pop %v1314
    %v1316 = vmul.f32 1.0, %v1315
    %v1317 = vtanh.pop %v1310
    %v1318 = vmul.f32 %v1316, %v1125
    %1320 = vrot.lane.b32.xlu0 %v1317, 64
    %v1321 = vpop.permute.xlu0 %1320
    %v1323 = vmul.f32 %v1316, %v1321
    %1325 = vrot.lane.b32.xlu0 %v1323, 32
    %v1326 = vpop.permute.xlu0 %1325
    %v1328 = vadd.f32 %v1318, %v1326
    %v1329 = vtanh.pop %v1328
    %1331 = vrot.lane.b32.xlu0 %v1329, 64
    %v1332 = vpop.permute.xlu0 %1331
    %v1334 = vmul.f32 %v1316, %v1332
    %1336 = vrot.lane.b32.xlu0 %v1334, 32
    %v1337 = vpop.permute.xlu0 %1336
    %1340 = vrot.lane.b32.xlu0 %v1237, 64
    %v1341 = vpop.permute.xlu0 %1340
    %v1343 = vsel %vm218, %v1337, %v1341
    %v1345 = vsel %vm328, %v1343, 0
    %1347 = vmatprep.subr.mxu0 0.0
    %1348 = vmatpush1.msra.mxu0 0.0
    %1349 = vmatprep.subr.mxu0 0.0
    %1350 = vmatpush1.msra.mxu0 0.0
    %1351 = vmatprep.subr.mxu0 0.0
    %1352 = vmatpush1.msra.mxu0 0.0
    %1353 = vmatprep.subr.mxu0 0.0
    %1354 = vmatpush1.msra.mxu0 0.0
    %1355 = vmatprep.subr.mxu0 0.0
    %1356 = vmatpush1.msra.mxu0 0.0
    %1357 = vmatprep.subr.mxu0 0.0
    %1358 = vmatpush1.msra.mxu0 0.0
    %1359 = vmatprep.subr.mxu0 0.0
    %1360 = vmatpush1.msra.mxu0 0.0
    %1361 = vmatprep.subr.mxu0 0.0
    %1362 = vmatpush1.msra.mxu0 0.0
    %1363 = vmatprep.subr.mxu0 0.0
    %1364 = vmatpush1.msra.mxu0 %v216
    %1365 = vmatprep.subr.mxu0 0.0
    %1366 = vmatpush1.msra.mxu0 %v215
    %1367 = vmatprep.subr.mxu0 0.0
    %1368 = vmatpush1.msra.mxu0 %v214
    %1369 = vmatprep.subr.mxu0 0.0
    %1370 = vmatpush1.msra.mxu0 %v213
    %1371 = vmatprep.subr.mxu0 0.0
    %1372 = vmatpush1.msra.mxu0 %v212
    %1373 = vmatprep.subr.mxu0 0.0
    %1374 = vmatpush1.msra.mxu0 %v211
    %1375 = vmatprep.subr.mxu0 0.0
    %1376 = vmatpush1.msra.mxu0 %v210
    %1377 = vmatprep.subr.mxu0 0.0
    %1378 = vmatpush1.msra.mxu0 %v209
    %1379 = vmatprep.subr.mxu0 0.0
    %1380 = vmatpush2.msra.mxu0 0.0
    %1381 = vmatprep.subr.mxu0 0.0
    %1382 = vmatpush2.msra.mxu0 0.0
    %1383 = vmatprep.subr.mxu0 0.0
    %1384 = vmatpush2.msra.mxu0 0.0
    %1385 = vmatprep.subr.mxu0 0.0
    %1386 = vmatpush2.msra.mxu0 0.0
    %1387 = vmatprep.subr.mxu0 0.0
    %1388 = vmatpush2.msra.mxu0 0.0
    %1389 = vmatprep.subr.mxu0 0.0
    %1390 = vmatpush2.msra.mxu0 0.0
    %1391 = vmatprep.subr.mxu0 0.0
    %1392 = vmatpush2.msra.mxu0 0.0
    %1393 = vmatprep.subr.mxu0 0.0
    %1394 = vmatpush2.msra.mxu0 0.0
    %1395 = vmatprep.subr.mxu0 0.0
    %1396 = vmatpush2.msra.mxu0 0.0
    %1397 = vmatprep.subr.mxu0 0.0
    %1398 = vmatpush2.msra.mxu0 0.0
    %1399 = vmatprep.subr.mxu0 0.0
    %1400 = vmatpush2.msra.mxu0 0.0
    %1401 = vmatprep.subr.mxu0 0.0
    %1402 = vmatpush2.msra.mxu0 0.0
    %1403 = vmatprep.subr.mxu0 0.0
    %1404 = vmatpush2.msra.mxu0 0.0
    %1405 = vmatprep.subr.mxu0 0.0
    %1406 = vmatpush2.msra.mxu0 0.0
    %1407 = vmatprep.subr.mxu0 0.0
    %1408 = vmatpush2.msra.mxu0 0.0
    %1409 = vmatprep.subr.mxu0 0.0
    %1410 = vmatpush2.msra.mxu0 0.0
    %1411 = vmatprep.mubr.f32.mxu0 0.0
    %1412 = vmatmul.mubr.f32.gmra.mxu0 %v1345
    %v1413 = vpop.f32.mrf.mxu0
    %v1414 = vadd.f32 %v326, %v1413
    %v1415 = vpop.f32.mrf.mxu0
    %1416 = vdwg.mxu0
    %v1417 = vxor.u32 %v1414, 2147483648
    %v1418 = vmul.f32 %v1417, 1.442695
    %v1419 = vpow.pop %v1418
    %v1420 = vadd.f32 %v1419, 1.0
    %v1421 = vrcp.pop %v1420
    %v1422 = vmul.f32 1.0, %v1421
    %v1423 = vtanh.pop %v1414
    %v1424 = vmul.f32 %v1422, %v1231
    %1426 = vrot.lane.b32.xlu0 %v1423, 64
    %v1427 = vpop.permute.xlu0 %1426
    %v1429 = vmul.f32 %v1422, %v1427
    %1431 = vrot.lane.b32.xlu0 %v1429, 32
    %v1432 = vpop.permute.xlu0 %1431
    %v1434 = vadd.f32 %v1424, %v1432
    %v1435 = vtanh.pop %v1434
    %1437 = vrot.lane.b32.xlu0 %v1435, 64
    %v1438 = vpop.permute.xlu0 %1437
    %v1440 = vmul.f32 %v1422, %v1438
    %v1441 = vsel %vm218, %v1337, 0
    %1443 = vmatprep.subr.mxu0 0.0
    %1444 = vmatpush1.msra.mxu0 0.0
    %1445 = vmatprep.subr.mxu0 0.0
    %1446 = vmatpush1.msra.mxu0 0.0
    %1447 = vmatprep.subr.mxu0 0.0
    %1448 = vmatpush1.msra.mxu0 0.0
    %1449 = vmatprep.subr.mxu0 0.0
    %1450 = vmatpush1.msra.mxu0 0.0
    %1451 = vmatprep.subr.mxu0 0.0
    %1452 = vmatpush1.msra.mxu0 0.0
    %1453 = vmatprep.subr.mxu0 0.0
    %1454 = vmatpush1.msra.mxu0 0.0
    %1455 = vmatprep.subr.mxu0 0.0
    %1456 = vmatpush1.msra.mxu0 0.0
    %1457 = vmatprep.subr.mxu0 0.0
    %1458 = vmatpush1.msra.mxu0 0.0
    %1459 = vmatprep.subr.mxu0 0.0
    %1460 = vmatpush1.msra.mxu0 0.0
    %1461 = vmatprep.subr.mxu0 0.0
    %1462 = vmatpush1.msra.mxu0 0.0
    %1463 = vmatprep.subr.mxu0 0.0
    %1464 = vmatpush1.msra.mxu0 0.0
    %1465 = vmatprep.subr.mxu0 0.0
    %1466 = vmatpush1.msra.mxu0 0.0
    %1467 = vmatprep.subr.mxu0 0.0
    %1468 = vmatpush1.msra.mxu0 %v208
    %1469 = vmatprep.subr.mxu0 0.0
    %1470 = vmatpush1.msra.mxu0 %v207
    %1471 = vmatprep.subr.mxu0 0.0
    %1472 = vmatpush1.msra.mxu0 %v206
    %1473 = vmatprep.subr.mxu0 0.0
    %1474 = vmatpush1.msra.mxu0 %v205
    %1475 = vmatprep.subr.mxu0 0.0
    %1476 = vmatpush2.msra.mxu0 0.0
    %1477 = vmatprep.subr.mxu0 0.0
    %1478 = vmatpush2.msra.mxu0 0.0
    %1479 = vmatprep.subr.mxu0 0.0
    %1480 = vmatpush2.msra.mxu0 0.0
    %1481 = vmatprep.subr.mxu0 0.0
    %1482 = vmatpush2.msra.mxu0 0.0
    %1483 = vmatprep.subr.mxu0 0.0
    %1484 = vmatpush2.msra.mxu0 0.0
    %1485 = vmatprep.subr.mxu0 0.0
    %1486 = vmatpush2.msra.mxu0 0.0
    %1487 = vmatprep.subr.mxu0 0.0
    %1488 = vmatpush2.msra.mxu0 0.0
    %1489 = vmatprep.subr.mxu0 0.0
    %1490 = vmatpush2.msra.mxu0 0.0
    %1491 = vmatprep.subr.mxu0 0.0
    %1492 = vmatpush2.msra.mxu0 0.0
    %1493 = vmatprep.subr.mxu0 0.0
    %1494 = vmatpush2.msra.mxu0 0.0
    %1495 = vmatprep.subr.mxu0 0.0
    %1496 = vmatpush2.msra.mxu0 0.0
    %1497 = vmatprep.subr.mxu0 0.0
    %1498 = vmatpush2.msra.mxu0 0.0
    %1499 = vmatprep.subr.mxu0 0.0
    %1500 = vmatpush2.msra.mxu0 0.0
    %1501 = vmatprep.subr.mxu0 0.0
    %1502 = vmatpush2.msra.mxu0 0.0
    %1503 = vmatprep.subr.mxu0 0.0
    %1504 = vmatpush2.msra.mxu0 0.0
    %1505 = vmatprep.subr.mxu0 0.0
    %1506 = vmatpush2.msra.mxu0 0.0
    %1507 = vmatprep.mubr.f32.mxu0 0.0
    %1508 = vmatmul.mubr.f32.gmra.mxu0 %v1441
    %v1509 = vpop.f32.mrf.mxu0
    %v1510 = vadd.f32 0.0, %v1509
    %v1511 = vpop.f32.mrf.mxu0
    %1512 = vdwg.mxu0
    %v1513 = vadd.f32 %v197, %v1510
    %v1514 = vxor.u32 %v1513, 2147483648
    %v1515 = vmul.f32 %v1514, 1.442695
    %v1516 = vpow.pop %v1515
    %v1517 = vadd.f32 %v1516, 1.0
    %v1518 = vrcp.pop %v1517
    %v1519 = vmul.f32 1.0, %v1518
    %v1520 = vtanh.pop %v1513
    %v1521 = vmul.f32 %v1519, %v1328
    %1523 = vrot.lane.b32.xlu0 %v1520, 64
    %v1524 = vpop.permute.xlu0 %1523
    %v1526 = vmul.f32 %v1519, %v1524
    %1528 = vrot.lane.b32.xlu0 %v1526, 32
    %v1529 = vpop.permute.xlu0 %1528
    %v1531 = vadd.f32 %v1521, %v1529
    %v1532 = vtanh.pop %v1531
    %1534 = vrot.lane.b32.xlu0 %v1532, 64
    %v1535 = vpop.permute.xlu0 %1534
    %v1537 = vmul.f32 %v1519, %v1535
    %1539 = vrot.lane.b32.xlu0 %v1537, 32
    %v1540 = vpop.permute.xlu0 %1539
    %1543 = vrot.lane.b32.xlu0 %v1440, 64
    %v1544 = vpop.permute.xlu0 %1543
    %v1546 = vsel %vm218, %v1540, %v1544
    %v1548 = vsel %vm328, %v1546, 0
    %1550 = vmatprep.subr.mxu0 0.0
    %1551 = vmatpush1.msra.mxu0 0.0
    %1552 = vmatprep.subr.mxu0 0.0
    %1553 = vmatpush1.msra.mxu0 0.0
    %1554 = vmatprep.subr.mxu0 0.0
    %1555 = vmatpush1.msra.mxu0 0.0
    %1556 = vmatprep.subr.mxu0 0.0
    %1557 = vmatpush1.msra.mxu0 0.0
    %1558 = vmatprep.subr.mxu0 0.0
    %1559 = vmatpush1.msra.mxu0 0.0
    %1560 = vmatprep.subr.mxu0 0.0
    %1561 = vmatpush1.msra.mxu0 0.0
    %1562 = vmatprep.subr.mxu0 0.0
    %1563 = vmatpush1.msra.mxu0 0.0
    %1564 = vmatprep.subr.mxu0 0.0
    %1565 = vmatpush1.msra.mxu0 0.0
    %1566 = vmatprep.subr.mxu0 0.0
    %1567 = vmatpush1.msra.mxu0 %v216
    %1568 = vmatprep.subr.mxu0 0.0
    %1569 = vmatpush1.msra.mxu0 %v215
    %1570 = vmatprep.subr.mxu0 0.0
    %1571 = vmatpush1.msra.mxu0 %v214
    %1572 = vmatprep.subr.mxu0 0.0
    %1573 = vmatpush1.msra.mxu0 %v213
    %1574 = vmatprep.subr.mxu0 0.0
    %1575 = vmatpush1.msra.mxu0 %v212
    %1576 = vmatprep.subr.mxu0 0.0
    %1577 = vmatpush1.msra.mxu0 %v211
    %1578 = vmatprep.subr.mxu0 0.0
    %1579 = vmatpush1.msra.mxu0 %v210
    %1580 = vmatprep.subr.mxu0 0.0
    %1581 = vmatpush1.msra.mxu0 %v209
    %1582 = vmatprep.subr.mxu0 0.0
    %1583 = vmatpush2.msra.mxu0 0.0
    %1584 = vmatprep.subr.mxu0 0.0
    %1585 = vmatpush2.msra.mxu0 0.0
    %1586 = vmatprep.subr.mxu0 0.0
    %1587 = vmatpush2.msra.mxu0 0.0
    %1588 = vmatprep.subr.mxu0 0.0
    %1589 = vmatpush2.msra.mxu0 0.0
    %1590 = vmatprep.subr.mxu0 0.0
    %1591 = vmatpush2.msra.mxu0 0.0
    %1592 = vmatprep.subr.mxu0 0.0
    %1593 = vmatpush2.msra.mxu0 0.0
    %1594 = vmatprep.subr.mxu0 0.0
    %1595 = vmatpush2.msra.mxu0 0.0
    %1596 = vmatprep.subr.mxu0 0.0
    %1597 = vmatpush2.msra.mxu0 0.0
    %1598 = vmatprep.subr.mxu0 0.0
    %1599 = vmatpush2.msra.mxu0 0.0
    %1600 = vmatprep.subr.mxu0 0.0
    %1601 = vmatpush2.msra.mxu0 0.0
    %1602 = vmatprep.subr.mxu0 0.0
    %1603 = vmatpush2.msra.mxu0 0.0
    %1604 = vmatprep.subr.mxu0 0.0
    %1605 = vmatpush2.msra.mxu0 0.0
    %1606 = vmatprep.subr.mxu0 0.0
    %1607 = vmatpush2.msra.mxu0 0.0
    %1608 = vmatprep.subr.mxu0 0.0
    %1609 = vmatpush2.msra.mxu0 0.0
    %1610 = vmatprep.subr.mxu0 0.0
    %1611 = vmatpush2.msra.mxu0 0.0
    %1612 = vmatprep.subr.mxu0 0.0
    %1613 = vmatpush2.msra.mxu0 0.0
    %1614 = vmatprep.mubr.f32.mxu0 0.0
    %1615 = vmatmul.mubr.f32.gmra.mxu0 %v1548
    %v1616 = vpop.f32.mrf.mxu0
    %v1617 = vadd.f32 %v326, %v1616
    %v1618 = vpop.f32.mrf.mxu0
    %1619 = vdwg.mxu0
    %v1620 = vxor.u32 %v1617, 2147483648
    %v1621 = vmul.f32 %v1620, 1.442695
    %v1622 = vpow.pop %v1621
    %v1623 = vadd.f32 %v1622, 1.0
    %v1624 = vrcp.pop %v1623
    %v1625 = vmul.f32 1.0, %v1624
    %v1626 = vtanh.pop %v1617
    %v1627 = vmul.f32 %v1625, %v1434
    %1629 = vrot.lane.b32.xlu0 %v1626, 64
    %v1630 = vpop.permute.xlu0 %1629
    %v1632 = vmul.f32 %v1625, %v1630
    %1634 = vrot.lane.b32.xlu0 %v1632, 32
    %v1635 = vpop.permute.xlu0 %1634
    %v1637 = vadd.f32 %v1627, %v1635
    %v1638 = vtanh.pop %v1637
    %1640 = vrot.lane.b32.xlu0 %v1638, 64
    %v1641 = vpop.permute.xlu0 %1640
    %v1643 = vmul.f32 %v1625, %v1641
    %v1644 = vsel %vm218, %v1540, 0
    %1646 = vmatprep.subr.mxu0 0.0
    %1647 = vmatpush1.msra.mxu0 0.0
    %1648 = vmatprep.subr.mxu0 0.0
    %1649 = vmatpush1.msra.mxu0 0.0
    %1650 = vmatprep.subr.mxu0 0.0
    %1651 = vmatpush1.msra.mxu0 0.0
    %1652 = vmatprep.subr.mxu0 0.0
    %1653 = vmatpush1.msra.mxu0 0.0
    %1654 = vmatprep.subr.mxu0 0.0
    %1655 = vmatpush1.msra.mxu0 0.0
    %1656 = vmatprep.subr.mxu0 0.0
    %1657 = vmatpush1.msra.mxu0 0.0
    %1658 = vmatprep.subr.mxu0 0.0
    %1659 = vmatpush1.msra.mxu0 0.0
    %1660 = vmatprep.subr.mxu0 0.0
    %1661 = vmatpush1.msra.mxu0 0.0
    %1662 = vmatprep.subr.mxu0 0.0
    %1663 = vmatpush1.msra.mxu0 0.0
    %1664 = vmatprep.subr.mxu0 0.0
    %1665 = vmatpush1.msra.mxu0 0.0
    %1666 = vmatprep.subr.mxu0 0.0
    %1667 = vmatpush1.msra.mxu0 0.0
    %1668 = vmatprep.subr.mxu0 0.0
    %1669 = vmatpush1.msra.mxu0 0.0
    %1670 = vmatprep.subr.mxu0 0.0
    %1671 = vmatpush1.msra.mxu0 %v208
    %1672 = vmatprep.subr.mxu0 0.0
    %1673 = vmatpush1.msra.mxu0 %v207
    %1674 = vmatprep.subr.mxu0 0.0
    %1675 = vmatpush1.msra.mxu0 %v206
    %1676 = vmatprep.subr.mxu0 0.0
    %1677 = vmatpush1.msra.mxu0 %v205
    %1678 = vmatprep.subr.mxu0 0.0
    %1679 = vmatpush2.msra.mxu0 0.0
    %1680 = vmatprep.subr.mxu0 0.0
    %1681 = vmatpush2.msra.mxu0 0.0
    %1682 = vmatprep.subr.mxu0 0.0
    %1683 = vmatpush2.msra.mxu0 0.0
    %1684 = vmatprep.subr.mxu0 0.0
    %1685 = vmatpush2.msra.mxu0 0.0
    %1686 = vmatprep.subr.mxu0 0.0
    %1687 = vmatpush2.msra.mxu0 0.0
    %1688 = vmatprep.subr.mxu0 0.0
    %1689 = vmatpush2.msra.mxu0 0.0
    %1690 = vmatprep.subr.mxu0 0.0
    %1691 = vmatpush2.msra.mxu0 0.0
    %1692 = vmatprep.subr.mxu0 0.0
    %1693 = vmatpush2.msra.mxu0 0.0
    %1694 = vmatprep.subr.mxu0 0.0
    %1695 = vmatpush2.msra.mxu0 0.0
    %1696 = vmatprep.subr.mxu0 0.0
    %1697 = vmatpush2.msra.mxu0 0.0
    %1698 = vmatprep.subr.mxu0 0.0
    %1699 = vmatpush2.msra.mxu0 0.0
    %1700 = vmatprep.subr.mxu0 0.0
    %1701 = vmatpush2.msra.mxu0 0.0
    %1702 = vmatprep.subr.mxu0 0.0
    %1703 = vmatpush2.msra.mxu0 0.0
    %1704 = vmatprep.subr.mxu0 0.0
    %1705 = vmatpush2.msra.mxu0 0.0
    %1706 = vmatprep.subr.mxu0 0.0
    %1707 = vmatpush2.msra.mxu0 0.0
    %1708 = vmatprep.subr.mxu0 0.0
    %1709 = vmatpush2.msra.mxu0 0.0
    %1710 = vmatprep.mubr.f32.mxu0 0.0
    %1711 = vmatmul.mubr.f32.gmra.mxu0 %v1644
    %v1712 = vpop.f32.mrf.mxu0
    %v1713 = vadd.f32 0.0, %v1712
    %v1714 = vpop.f32.mrf.mxu0
    %1715 = vdwg.mxu0
    %v1716 = vadd.f32 %v202, %v1713
    %v1717 = vxor.u32 %v1716, 2147483648
    %v1718 = vmul.f32 %v1717, 1.442695
    %v1719 = vpow.pop %v1718
    %v1720 = vadd.f32 %v1719, 1.0
    %v1721 = vrcp.pop %v1720
    %v1722 = vmul.f32 1.0, %v1721
    %v1723 = vtanh.pop %v1716
    %v1724 = vmul.f32 %v1722, %v1531
    %1726 = vrot.lane.b32.xlu0 %v1723, 64
    %v1727 = vpop.permute.xlu0 %1726
    %v1729 = vmul.f32 %v1722, %v1727
    %1731 = vrot.lane.b32.xlu0 %v1729, 32
    %v1732 = vpop.permute.xlu0 %1731
    %v1734 = vadd.f32 %v1724, %v1732
    %v1735 = vtanh.pop %v1734
    %1737 = vrot.lane.b32.xlu0 %v1735, 64
    %v1738 = vpop.permute.xlu0 %1737
    %v1740 = vmul.f32 %v1722, %v1738
    %1742 = vrot.lane.b32.xlu0 %v1740, 32
    %v1743 = vpop.permute.xlu0 %1742
    %1746 = vrot.lane.b32.xlu0 %v1643, 64
    %v1747 = vpop.permute.xlu0 %1746
    %v1749 = vsel %vm218, %v1743, %v1747
    %v1751 = vsel %vm328, %v1749, 0
    %1753 = vmatprep.subr.mxu0 0.0
    %1754 = vmatpush1.msra.mxu0 0.0
    %1755 = vmatprep.subr.mxu0 0.0
    %1756 = vmatpush1.msra.mxu0 0.0
    %1757 = vmatprep.subr.mxu0 0.0
    %1758 = vmatpush1.msra.mxu0 0.0
    %1759 = vmatprep.subr.mxu0 0.0
    %1760 = vmatpush1.msra.mxu0 0.0
    %1761 = vmatprep.subr.mxu0 0.0
    %1762 = vmatpush1.msra.mxu0 0.0
    %1763 = vmatprep.subr.mxu0 0.0
    %1764 = vmatpush1.msra.mxu0 0.0
    %1765 = vmatprep.subr.mxu0 0.0
    %1766 = vmatpush1.msra.mxu0 0.0
    %1767 = vmatprep.subr.mxu0 0.0
    %1768 = vmatpush1.msra.mxu0 0.0
    %1769 = vmatprep.subr.mxu0 0.0
    %1770 = vmatpush1.msra.mxu0 %v216
    %1771 = vmatprep.subr.mxu0 0.0
    %1772 = vmatpush1.msra.mxu0 %v215
    %1773 = vmatprep.subr.mxu0 0.0
    %1774 = vmatpush1.msra.mxu0 %v214
    %1775 = vmatprep.subr.mxu0 0.0
    %1776 = vmatpush1.msra.mxu0 %v213
    %1777 = vmatprep.subr.mxu0 0.0
    %1778 = vmatpush1.msra.mxu0 %v212
    %1779 = vmatprep.subr.mxu0 0.0
    %1780 = vmatpush1.msra.mxu0 %v211
    %1781 = vmatprep.subr.mxu0 0.0
    %1782 = vmatpush1.msra.mxu0 %v210
    %1783 = vmatprep.subr.mxu0 0.0
    %1784 = vmatpush1.msra.mxu0 %v209
    %1785 = vmatprep.subr.mxu0 0.0
    %1786 = vmatpush2.msra.mxu0 0.0
    %1787 = vmatprep.subr.mxu0 0.0
    %1788 = vmatpush2.msra.mxu0 0.0
    %1789 = vmatprep.subr.mxu0 0.0
    %1790 = vmatpush2.msra.mxu0 0.0
    %1791 = vmatprep.subr.mxu0 0.0
    %1792 = vmatpush2.msra.mxu0 0.0
    %1793 = vmatprep.subr.mxu0 0.0
    %1794 = vmatpush2.msra.mxu0 0.0
    %1795 = vmatprep.subr.mxu0 0.0
    %1796 = vmatpush2.msra.mxu0 0.0
    %1797 = vmatprep.subr.mxu0 0.0
    %1798 = vmatpush2.msra.mxu0 0.0
    %1799 = vmatprep.subr.mxu0 0.0
    %1800 = vmatpush2.msra.mxu0 0.0
    %1801 = vmatprep.subr.mxu0 0.0
    %1802 = vmatpush2.msra.mxu0 0.0
    %1803 = vmatprep.subr.mxu0 0.0
    %1804 = vmatpush2.msra.mxu0 0.0
    %1805 = vmatprep.subr.mxu0 0.0
    %1806 = vmatpush2.msra.mxu0 0.0
    %1807 = vmatprep.subr.mxu0 0.0
    %1808 = vmatpush2.msra.mxu0 0.0
    %1809 = vmatprep.subr.mxu0 0.0
    %1810 = vmatpush2.msra.mxu0 0.0
    %1811 = vmatprep.subr.mxu0 0.0
    %1812 = vmatpush2.msra.mxu0 0.0
    %1813 = vmatprep.subr.mxu0 0.0
    %1814 = vmatpush2.msra.mxu0 0.0
    %1815 = vmatprep.subr.mxu0 0.0
    %1816 = vmatpush2.msra.mxu0 0.0
    %1817 = vmatprep.mubr.f32.mxu0 0.0
    %1818 = vmatmul.mubr.f32.gmra.mxu0 %v1751
    %v1819 = vpop.f32.mrf.mxu0
    %v1820 = vadd.f32 %v326, %v1819
    %v1821 = vpop.f32.mrf.mxu0
    %1822 = vdwg.mxu0
    %v1823 = vxor.u32 %v1820, 2147483648
    %v1824 = vmul.f32 %v1823, 1.442695
    %v1825 = vpow.pop %v1824
    %v1826 = vadd.f32 %v1825, 1.0
    %v1827 = vrcp.pop %v1826
    %v1828 = vmul.f32 1.0, %v1827
    %v1829 = vtanh.pop %v1820
    %v1830 = vmul.f32 %v1828, %v1637
    %1832 = vrot.lane.b32.xlu0 %v1829, 64
    %v1833 = vpop.permute.xlu0 %1832
    %v1835 = vmul.f32 %v1828, %v1833
    %1837 = vrot.lane.b32.xlu0 %v1835, 32
    %v1838 = vpop.permute.xlu0 %1837
    %v1840 = vadd.f32 %v1830, %v1838
    %v1841 = vtanh.pop %v1840
    %1843 = vrot.lane.b32.xlu0 %v1841, 64
    %v1844 = vpop.permute.xlu0 %1843
    %v1846 = vmul.f32 %v1828, %v1844
    %v1847 = vld [vmem:[#allocation5] sm:$0xff]
    %v1848 = vld [vmem:[#allocation5 + $0x8] sm:$0xff]
    %v1849 = vld [vmem:[#allocation5 + $0x10] sm:$0xff]
    %v1850 = vld [vmem:[#allocation5 + $0x18] sm:$0xff]
    %v1851 = vld [vmem:[%s7] sm:$0x1]
    %v1853 = vlaneseq
    %v1854 = vshrl.u32 %v1853, 7
    %v1855 = vsub.s32 0, %v1854
    %v1856 = vrot.slane %v1851, %v1855
    %1859 = vrot.lane.b32.xlu0 %v1846, 32
    %v1860 = vpop.permute.xlu0 %1859
    %v1861 = vsel %vm218, %v1860, 0
    %1863 = vmatprep.subr.mxu0 0.0
    %1864 = vmatpush1.msra.mxu0 0.0
    %1865 = vmatprep.subr.mxu0 0.0
    %1866 = vmatpush1.msra.mxu0 0.0
    %1867 = vmatprep.subr.mxu0 0.0
    %1868 = vmatpush1.msra.mxu0 0.0
    %1869 = vmatprep.subr.mxu0 0.0
    %1870 = vmatpush1.msra.mxu0 0.0
    %1871 = vmatprep.subr.mxu0 0.0
    %1872 = vmatpush1.msra.mxu0 0.0
    %1873 = vmatprep.subr.mxu0 0.0
    %1874 = vmatpush1.msra.mxu0 0.0
    %1875 = vmatprep.subr.mxu0 0.0
    %1876 = vmatpush1.msra.mxu0 0.0
    %1877 = vmatprep.subr.mxu0 0.0
    %1878 = vmatpush1.msra.mxu0 0.0
    %1879 = vmatprep.subr.mxu0 0.0
    %1880 = vmatpush1.msra.mxu0 0.0
    %1881 = vmatprep.subr.mxu0 0.0
    %1882 = vmatpush1.msra.mxu0 0.0
    %1883 = vmatprep.subr.mxu0 0.0
    %1884 = vmatpush1.msra.mxu0 0.0
    %1885 = vmatprep.subr.mxu0 0.0
    %1886 = vmatpush1.msra.mxu0 0.0
    %1887 = vmatprep.subr.mxu0 0.0
    %1888 = vmatpush1.msra.mxu0 %v1850
    %1889 = vmatprep.subr.mxu0 0.0
    %1890 = vmatpush1.msra.mxu0 %v1849
    %1891 = vmatprep.subr.mxu0 0.0
    %1892 = vmatpush1.msra.mxu0 %v1848
    %1893 = vmatprep.subr.mxu0 0.0
    %1894 = vmatpush1.msra.mxu0 %v1847
    %1895 = vmatprep.subr.mxu0 0.0
    %1896 = vmatpush2.msra.mxu0 0.0
    %1897 = vmatprep.subr.mxu0 0.0
    %1898 = vmatpush2.msra.mxu0 0.0
    %1899 = vmatprep.subr.mxu0 0.0
    %1900 = vmatpush2.msra.mxu0 0.0
    %1901 = vmatprep.subr.mxu0 0.0
    %1902 = vmatpush2.msra.mxu0 0.0
    %1903 = vmatprep.subr.mxu0 0.0
    %1904 = vmatpush2.msra.mxu0 0.0
    %1905 = vmatprep.subr.mxu0 0.0
    %1906 = vmatpush2.msra.mxu0 0.0
    %1907 = vmatprep.subr.mxu0 0.0
    %1908 = vmatpush2.msra.mxu0 0.0
    %1909 = vmatprep.subr.mxu0 0.0
    %1910 = vmatpush2.msra.mxu0 0.0
    %1911 = vmatprep.subr.mxu0 0.0
    %1912 = vmatpush2.msra.mxu0 0.0
    %1913 = vmatprep.subr.mxu0 0.0
    %1914 = vmatpush2.msra.mxu0 0.0
    %1915 = vmatprep.subr.mxu0 0.0
    %1916 = vmatpush2.msra.mxu0 0.0
    %1917 = vmatprep.subr.mxu0 0.0
    %1918 = vmatpush2.msra.mxu0 0.0
    %1919 = vmatprep.subr.mxu0 0.0
    %1920 = vmatpush2.msra.mxu0 0.0
    %1921 = vmatprep.subr.mxu0 0.0
    %1922 = vmatpush2.msra.mxu0 0.0
    %1923 = vmatprep.subr.mxu0 0.0
    %1924 = vmatpush2.msra.mxu0 0.0
    %1925 = vmatprep.subr.mxu0 0.0
    %1926 = vmatpush2.msra.mxu0 0.0
    %1927 = vmatprep.mubr.f32.mxu0 0.0
    %1928 = vmatmul.mubr.f32.gmra.mxu0 %v1861
    %v1929 = vpop.f32.mrf.mxu0
    %v1930 = vadd.f32 %v1856, %v1929
    %v1931 = vpop.f32.mrf.mxu0
    %1932 = vdwg.mxu0
    %1933 = vst [vmem:[#allocation7] sm:$0xff] %v1930
    // Predicated region
    $region42: #{tpu_custom_call.1} parent=1 // pred_check
      _
    $region43: #{tpu_custom_call.1} parent=1 // pred_check_branch
      %1935 = sbr.rel (0) target = $region45
    $region44: #{tpu_custom_call.1} parent=1 // pred_region
      %s1937 = ssub.s32 128, 128
      %1938 = vsyncadd [#allocation4], %s1937
      %s1940 = sshll.u32 [#allocation7], 4
      %s1941 = int_to_ptr.vmem [resolvable:$true] %s1940
      %1943 = dma.vmem_to_hbm [thread:$0]  %s1941, 128, %s8, [#allocation4]
    $region45: #{tpu_custom_call.1} parent=1 // pred_fallthru
      _
    // Predicated region
    $region46: #{tpu_custom_call.1} parent=1 // pred_check
      _
    $region47: #{tpu_custom_call.1} parent=1 // pred_check_branch
      %1945 = sbr.rel (0) target = $region49
    $region48: #{tpu_custom_call.1} parent=1 // pred_region
      %1946 = dma.done [#allocation4], 128
    $region49: #{tpu_custom_call.1} parent=1 // pred_fallthru
      _
    %1947 = vsyncpa [#allocation3], 1
    %1948 = vsyncpa [#allocation6], 1
    %1949 = vsyncpa [#allocation4], 1

</llo_original>
